<compile_context>
chip_gen: v6e
topology: v6e:2x2x1
jax: 0.10.0
libtpu: 0.0.40
codegen_flags: <defaults>
</compile_context>

<pallas_src>
import jax
import jax.numpy as jnp
from jax import lax
from jax.experimental import pallas as pl
from jax.experimental.pallas import tpu as pltpu

D = 4             # point feature dim
H = 32            # odefunc hidden width
C = 8             # context (condition) dim
NUM_STEPS = 16    # fixed RK4 steps
# TODO(synk): adaptive dopri5 + odeint_adjoint (seminorm) have no clean Pallas
# equivalent; a fixed-step RK4 integrator over [t0, t1] is used instead.

GW = 2 * H + D        # fused hyper slab height (68)
GP = 72               # GW padded to a sublane-group multiple of 8
IN_W = 16             # packed input rows:  [x(4) | logp(1) | pad(3) | ctx(8)]
OUT_W = 8             # packed output rows: [z(4) | logp(1) | pad(3)]
S2_ROWS = H + D * H   # fused layer-2 output rows (160)


def _pick_tile(num_cols):
    # Keep >= 2 grid blocks when possible (v7x: 2 TensorCores share the grid via
    # dimension_semantics=("parallel",)), and cap at 512 so per-stage (72,TILE)
    # f32 intermediates stay far inside v5e's 16 MiB default scoped VMEM.
    for t in (512, 256):
        if num_cols >= 2 * t:
            return t
    return 128


def cnf_kernel(tp_ref, io_ref, w1_ref, w2b_ref, w3b_ref, hyp_ref, out_ref):
    t0 = tp_ref[0]
    dt = tp_ref[1]

    io = io_ref[...]                       # (IN_W, TILE) f32
    x0 = io[0:D, :]                        # (D, TILE)
    lp0 = io[D:D + 1, :]                   # (1, TILE)
    ctx = io[8:16, :]                      # (C, TILE)  (group-aligned slice)

    w1t = w1_ref[...]                      # (H, D)            matmul dtype
    w2b = w2b_ref[...]                     # (S2_ROWS, 2H)     matmul dtype
    w3b = w3b_ref[...]                     # (2D, S2_ROWS)     matmul dtype
    md = w1t.dtype

    # Hyper-net: ctx contribution computed ONCE per block (f32, K=C=8).
    hyp = hyp_ref[...]                     # (2*GP, C+3) f32
    base = jnp.dot(hyp[:, 0:C], ctx,
                   preferred_element_type=jnp.float32) + hyp[:, C + 1:C + 2]
    wt = hyp[:, C:C + 1]                   # (2*GP, 1)  t-weights
    bcol = hyp[GP:, C + 2:C + 3]           # (GP, 1)    static layer biases

    def mm(w, a):
        # MXU matmul; operands in weight dtype (bf16 by default), f32 acc.
        return jnp.dot(w, a.astype(md), preferred_element_type=jnp.float32)

    def hyper_at(t):
        # Gates / hyper-biases depend only on (t, ctx) -> one fused fma +
        # sigmoid per distinct RK4 time; static biases folded in here.
        pre = base + t * wt                          # (2*GP, TILE)
        gates = jax.nn.sigmoid(pre[0:GP, :])         # (GP, TILE)
        hb = pre[GP:, :] + bcol * gates              # (GP, TILE)
        return gates, hb

    def odefunc(x, gates, hb):
        # dx/dt = net(t, x, ctx);  dlogp/dt = -Tr(d net / d x)  (exact trace)
        g1 = gates[0:H, :]
        g2 = gates[H:2 * H, :]
        g3 = gates[2 * H:GW, :]
        h1 = hb[0:H, :]
        h2 = hb[H:2 * H, :]
        h3 = hb[2 * H:GW, :]

        a1 = jnp.tanh(mm(w1t, x) * g1 + h1)                        # (H, TILE)
        d1g1 = (1.0 - a1 * a1) * g1

        # Fused layer-2: [w2.T @ a1 ; w2_stackT @ d1g1] in one MXU matmul.
        s2 = mm(w2b, jnp.concatenate([a1.astype(md), d1g1.astype(md)],
                                     axis=0))                      # (160, TILE)
        a2 = jnp.tanh(s2[0:H, :] * g2 + h2)
        d2g2 = (1.0 - a2 * a2) * g2
        ud = s2[H:, :] * jnp.concatenate([d2g2] * D, axis=0)       # (128, TILE)

        # Fused layer-3: [w3.T @ a2 ; w3_bdT @ ud] in one MXU matmul.
        s3 = mm(w3b, jnp.concatenate([a2.astype(md), ud.astype(md)],
                                     axis=0))                      # (8, TILE)
        dx = s3[0:D, :] * g3 + h3                                  # (D, TILE)
        div = jnp.sum(g3 * s3[D:, :], axis=0, keepdims=True)       # (1, TILE)
        return dx, -div

    def rk4_step(i, carry):
        x, lp, g_a, h_a = carry                 # g_a/h_a: hyper set at t_i
        t = t0 + dt * i.astype(jnp.float32)
        g_m, h_m = hyper_at(t + 0.5 * dt)       # shared by k2 and k3
        g_b, h_b = hyper_at(t + dt)             # k4; reused as next step's k1
        k1x, k1l = odefunc(x, g_a, h_a)
        k2x, k2l = odefunc(x + 0.5 * dt * k1x, g_m, h_m)
        k3x, k3l = odefunc(x + 0.5 * dt * k2x, g_m, h_m)
        k4x, k4l = odefunc(x + dt * k3x, g_b, h_b)
        x_new = x + (dt / 6.0) * (k1x + 2.0 * (k2x + k3x) + k4x)
        lp_new = lp + (dt / 6.0) * (k1l + 2.0 * (k2l + k3l) + k4l)
        return x_new, lp_new, g_b, h_b

    g0, h0 = hyper_at(t0)
    x_f, lp_f, _, _ = lax.fori_loop(0, NUM_STEPS, rk4_step, (x0, lp0, g0, h0))

    pad = jnp.zeros((OUT_W - D - 1, x_f.shape[1]), jnp.float32)
    out_ref[...] = jnp.concatenate([x_f, lp_f, pad], axis=0)


def init_params(key):
    ks = jax.random.split(key, 9)

    def nrm(k, shape, scale):
        return jax.random.normal(k, shape, jnp.float32) * scale

    return dict(
        w1=nrm(ks[0], (D, H), D ** -0.5), b1=jnp.zeros((1, H), jnp.float32),
        g1w=nrm(ks[1], (1 + C, H), 0.1), g1b=jnp.zeros((1, H), jnp.float32),
        h1w=nrm(ks[2], (1 + C, H), 0.1),
        w2=nrm(ks[3], (H, H), H ** -0.5), b2=jnp.zeros((1, H), jnp.float32),
        g2w=nrm(ks[4], (1 + C, H), 0.1), g2b=jnp.zeros((1, H), jnp.float32),
        h2w=nrm(ks[5], (1 + C, H), 0.1),
        w3=nrm(ks[6], (H, D), H ** -0.5), b3=jnp.zeros((1, D), jnp.float32),
        g3w=nrm(ks[7], (1 + C, D), 0.1), g3b=jnp.zeros((1, D), jnp.float32),
        h3w=nrm(ks[8], (1 + C, D), 0.1),
    )


def _pack_params(params, matmul_dtype):
    """Pack the 15 raw parameter arrays into 4 kernel inputs (once, in JAX)."""
    md = matmul_dtype
    w1 = params["w1"].astype(jnp.float32)     # (D, H)
    w2 = params["w2"].astype(jnp.float32)     # (H, H)
    w3 = params["w3"].astype(jnp.float32)     # (H, D)

    # Divergence-probe stacked weights (transposed layout):
    #   w2_stackT[i*H + k, m] = w1[i, m] * w2[m, k]        -> (D*H, H)
    #   w3_bdT[i, i*H + k]    = w3[k, i]                   -> (D, D*H)
    w2_stackT = jnp.concatenate(
        [(w1[i, :][:, None] * w2).T for i in range(D)], axis=0)
    w3_bdT = jnp.zeros((D, D * H), jnp.float32)
    for i in range(D):
        w3_bdT = w3_bdT.at[i, i * H:(i + 1) * H].set(w3[:, i])

    # Block-diagonal fused layer-2 / layer-3 weights.
    w2b = jnp.zeros((S2_ROWS, 2 * H), jnp.float32)
    w2b = w2b.at[0:H, 0:H].set(w2.T)
    w2b = w2b.at[H:, H:].set(w2_stackT)
    w3b = jnp.zeros((2 * D, S2_ROWS), jnp.float32)
    w3b = w3b.at[0:D, 0:H].set(w3.T)
    w3b = w3b.at[D:, H:].set(w3_bdT)

    # Hyper-net slab (f32):
    #   rows [0, GW)       gate weights : [ctx | t | gate-bias | 0]
    #   rows [GP, GP+GW)   hyper weights: [ctx | t | 0 | static layer bias]
    g_cat = jnp.concatenate([params["g1w"], params["g2w"], params["g3w"]],
                            axis=1)                       # (1+C, GW)
    h_cat = jnp.concatenate([params["h1w"], params["h2w"], params["h3w"]],
                            axis=1)                       # (1+C, GW)
    gbias = jnp.concatenate([params["g1b"], params["g2b"], params["g3b"]],
                            axis=1)                       # (1, GW)
    lbias = jnp.concatenate([params["b1"], params["b2"], params["b3"]],
                            axis=1)                       # (1, GW)
    hyp = jnp.zeros((2 * GP, C + 3), jnp.float32)
    hyp = hyp.at[0:GW, 0:C].set(g_cat[1:, :].T)
    hyp = hyp.at[0:GW, C].set(g_cat[0, :])
    hyp = hyp.at[0:GW, C + 1].set(gbias[0, :])
    hyp = hyp.at[GP:GP + GW, 0:C].set(h_cat[1:, :].T)
    hyp = hyp.at[GP:GP + GW, C].set(h_cat[0, :])
    hyp = hyp.at[GP:GP + GW, C + 2].set(lbias[0, :])

    return (w1.T.astype(md), w2b.astype(md), w3b.astype(md), hyp)


def cnf_forward(params, x, context=None, logpx=None, integration_times=None,
                reverse=False, T=1.0, conditional=True, matmul_dtype=None):
    """Mirrors CNF.forward (conditional=True, train_T=False)."""
    assert conditional and context is not None
    B, N, Dx = x.shape
    assert Dx == D
    if matmul_dtype is None:
        # bf16 operands (f32 accumulation) run the MXU at native rate on all
        # generations; pass jnp.float32 to validate logp precision if needed.
        matmul_dtype = jnp.bfloat16

    _logpx = jnp.zeros(x.shape[:-1] + (1,), x.dtype) if logpx is None else logpx
    if integration_times is None:
        integration_times = jnp.array([0.0, T], dtype=jnp.float32)
    integration_times = integration_times.astype(jnp.float32)
    if reverse:
        integration_times = integration_times[::-1]   # == _flip(times, 0)
    t0 = integration_times[0]
    dt = (integration_times[1] - integration_times[0]) / NUM_STEPS
    tparams = jnp.stack([t0, dt]).astype(jnp.float32)

    R = B * N
    tile = _pick_tile(R)
    R_pad = ((R + tile - 1) // tile) * tile
    pad = R_pad - R

    # Transposed packing: batch/point dim is the lane (last) dim.
    x_t = x.reshape(R, D).astype(jnp.float32).T                     # (D, R)
    lp_t = _logpx.reshape(R, 1).astype(jnp.float32).T               # (1, R)
    ctx_t = jnp.broadcast_to(context.astype(jnp.float32)[:, None, :],
                             (B, N, C)).reshape(R, C).T             # (C, R)
    io = jnp.concatenate(
        [x_t, lp_t, jnp.zeros((IN_W - (D + 1 + C), R), jnp.float32), ctx_t],
        axis=0)                                                     # (IN_W, R)
    io = jnp.pad(io, ((0, 0), (0, pad)))

    weights = _pack_params(params, matmul_dtype)

    def full_spec(a):
        return pl.BlockSpec(a.shape, lambda i: (0,) * a.ndim)

    in_specs = ([pl.BlockSpec(memory_space=pltpu.MemorySpace.SMEM),
                 pl.BlockSpec((IN_W, tile), lambda i: (0, i))]
                + [full_spec(w) for w in weights])
    out_specs = pl.BlockSpec((OUT_W, tile), lambda i: (0, i))
    out_shape = jax.ShapeDtypeStruct((OUT_W, R_pad), jnp.float32)

    out = pl.pallas_call(
        cnf_kernel,
        grid=(R_pad // tile,),
        in_specs=in_specs,
        out_specs=out_specs,
        out_shape=out_shape,
        compiler_params=pltpu.CompilerParams(
            dimension_semantics=("parallel",)),
    )(tparams, io, *weights)

    z_t = out[0:D, :R].T.reshape(B, N, D).astype(x.dtype)
    logpz_t = out[D:D + 1, :R].T.reshape(B, N, 1).astype(x.dtype)
    if logpx is not None:
        return z_t, logpz_t
    return z_t


if __name__ == "__main__":
    key = jax.random.PRNGKey(0)
    kp, kx, kc = jax.random.split(key, 3)
    params = init_params(kp)

    B, N = 2, 128
    x = jax.random.normal(kx, (B, N, D), jnp.float32)
    context = jax.random.normal(kc, (B, C), jnp.float32)
    logpx = jnp.zeros((B, N, 1), jnp.float32)

    # forward (x -> z) with log-density delta
    z_t, logpz_t = cnf_forward(params, x, context=context, logpx=logpx)
    jax.block_until_ready((z_t, logpz_t))

    # reverse pass (logpx=None branch returns z only)
    z_back = cnf_forward(params, z_t, context=context, logpx=None, reverse=True)
    jax.block_until_ready(z_back)

    assert z_t.shape == (B, N, D) and logpz_t.shape == (B, N, 1)
    assert bool(jnp.all(jnp.isfinite(z_t))) and bool(jnp.all(jnp.isfinite(logpz_t)))
    assert bool(jnp.all(jnp.isfinite(z_back)))
    print("KERNEL_OK")
</pallas_src>

<mosaic_0001>
module attributes {stable_mosaic.version = 11 : i64} {
  func.func @cnf_kernel(%arg0: i32, %arg1: memref<2xf32, #tpu.memory_space<smem>>, %arg2: memref<16x128xf32, #tpu.memory_space<vmem>>, %arg3: memref<32x4xbf16, #tpu.memory_space<vmem>>, %arg4: memref<160x64xbf16, #tpu.memory_space<vmem>>, %arg5: memref<8x160xbf16, #tpu.memory_space<vmem>>, %arg6: memref<144x11xf32, #tpu.memory_space<vmem>>, %arg7: memref<8x128xf32, #tpu.memory_space<vmem>>) attributes {dimension_semantics = [#tpu.dimension_semantics<parallel>], iteration_bounds = array<i64: 2>, scalar_prefetch = 0 : i64, scratch_operands = 0 : i64, tpu.core_type = #tpu.core_type<tc>, window_params = [{transform_indices = @transform_0, window_bounds = array<i64: 2>}, {transform_indices = @transform_1, window_bounds = array<i64: 16, 128>}, {pipeline_mode = #tpu.pipeline_mode<synchronous>, transform_indices = @transform_2, window_bounds = array<i64: 32, 4>}, {pipeline_mode = #tpu.pipeline_mode<synchronous>, transform_indices = @transform_3, window_bounds = array<i64: 160, 64>}, {pipeline_mode = #tpu.pipeline_mode<synchronous>, transform_indices = @transform_4, window_bounds = array<i64: 8, 160>}, {pipeline_mode = #tpu.pipeline_mode<synchronous>, transform_indices = @transform_5, window_bounds = array<i64: 144, 11>}, {transform_indices = @transform_6, window_bounds = array<i64: 8, 128>}]} {
    %c0 = arith.constant 0 : index
    %0 = memref.load %arg1[%c0] : memref<2xf32, #tpu.memory_space<smem>>
    %c1 = arith.constant 1 : index
    %1 = memref.load %arg1[%c1] : memref<2xf32, #tpu.memory_space<smem>>
    %c0_0 = arith.constant 0 : index
    %c0_1 = arith.constant 0 : index
    %2 = vector.load %arg2[%c0_0, %c0_1] : memref<16x128xf32, #tpu.memory_space<vmem>>, vector<16x128xf32>
    %3 = vector.extract_strided_slice %2 {offsets = [0, 0], sizes = [4, 128], strides = [1, 1]} : vector<16x128xf32> to vector<4x128xf32>
    %4 = vector.extract_strided_slice %2 {offsets = [4, 0], sizes = [1, 128], strides = [1, 1]} : vector<16x128xf32> to vector<1x128xf32>
    %5 = vector.extract_strided_slice %2 {offsets = [8, 0], sizes = [8, 128], strides = [1, 1]} : vector<16x128xf32> to vector<8x128xf32>
    %c0_2 = arith.constant 0 : index
    %c0_3 = arith.constant 0 : index
    %6 = vector.load %arg3[%c0_2, %c0_3] : memref<32x4xbf16, #tpu.memory_space<vmem>>, vector<32x4xbf16>
    %c0_4 = arith.constant 0 : index
    %c0_5 = arith.constant 0 : index
    %7 = vector.load %arg4[%c0_4, %c0_5] : memref<160x64xbf16, #tpu.memory_space<vmem>>, vector<160x64xbf16>
    %c0_6 = arith.constant 0 : index
    %c0_7 = arith.constant 0 : index
    %8 = vector.load %arg5[%c0_6, %c0_7] : memref<8x160xbf16, #tpu.memory_space<vmem>>, vector<8x160xbf16>
    %c0_8 = arith.constant 0 : index
    %c0_9 = arith.constant 0 : index
    %9 = vector.load %arg6[%c0_8, %c0_9] : memref<144x11xf32, #tpu.memory_space<vmem>>, vector<144x11xf32>
    %10 = vector.extract_strided_slice %9 {offsets = [0, 0], sizes = [144, 8], strides = [1, 1]} : vector<144x11xf32> to vector<144x8xf32>
    %cst = arith.constant dense<0.000000e+00> : vector<144x128xf32>
    %11 = tpu.matmul %10, %5, %cst {dimension_numbers = #tpu.dot_dimension_numbers<[1], [0], [0], [1], [0, 0, 1, 1], [], []>} : vector<144x8xf32>, vector<8x128xf32>, vector<144x128xf32> -> vector<144x128xf32>
    %12 = vector.extract_strided_slice %9 {offsets = [0, 9], sizes = [144, 1], strides = [1, 1]} : vector<144x11xf32> to vector<144x1xf32>
    %13 = vector.broadcast %12 : vector<144x1xf32> to vector<144x128xf32>
    %14 = arith.addf %11, %13 : vector<144x128xf32>
    %15 = vector.extract_strided_slice %9 {offsets = [0, 8], sizes = [144, 1], strides = [1, 1]} : vector<144x11xf32> to vector<144x1xf32>
    %16 = vector.extract_strided_slice %9 {offsets = [72, 10], sizes = [72, 1], strides = [1, 1]} : vector<144x11xf32> to vector<72x1xf32>
    %17 = vector.broadcast %0 : f32 to vector<144x1xf32>
    %18 = arith.mulf %17, %15 : vector<144x1xf32>
    %19 = vector.broadcast %18 : vector<144x1xf32> to vector<144x128xf32>
    %20 = arith.addf %14, %19 : vector<144x128xf32>
    %21 = vector.extract_strided_slice %20 {offsets = [0, 0], sizes = [72, 128], strides = [1, 1]} : vector<144x128xf32> to vector<72x128xf32>
    %22 = arith.negf %21 : vector<72x128xf32>
    %23 = math.exp %22 : vector<72x128xf32>
    %cst_10 = arith.constant 1.000000e+00 : f32
    %24 = vector.broadcast %cst_10 : f32 to vector<72x128xf32>
    %25 = arith.addf %24, %23 : vector<72x128xf32>
    %26 = arith.divf %24, %25 : vector<72x128xf32>
    %27 = vector.extract_strided_slice %20 {offsets = [72, 0], sizes = [72, 128], strides = [1, 1]} : vector<144x128xf32> to vector<72x128xf32>
    %28 = vector.broadcast %16 : vector<72x1xf32> to vector<72x128xf32>
    %29 = arith.mulf %28, %26 : vector<72x128xf32>
    %30 = arith.addf %27, %29 : vector<72x128xf32>
    %c0_i32 = arith.constant 0 : i32
    %c16_i32 = arith.constant 16 : i32
    %31 = arith.addi %c0_i32, %c16_i32 : i32
    %c1_i32 = arith.constant 1 : i32
    %32:4 = scf.for %arg8 = %c0_i32 to %31 step %c1_i32 iter_args(%arg9 = %3, %arg10 = %4, %arg11 = %26, %arg12 = %30) -> (vector<4x128xf32>, vector<1x128xf32>, vector<72x128xf32>, vector<72x128xf32>)  : i32 {
      %36 = arith.sitofp %arg8 : i32 to f32
      %37 = arith.mulf %1, %36 : f32
      %38 = arith.addf %0, %37 : f32
      %cst_15 = arith.constant 5.000000e-01 : f32
      %39 = arith.mulf %cst_15, %1 : f32
      %40 = arith.addf %38, %39 : f32
      %41 = vector.broadcast %40 : f32 to vector<144x1xf32>
      %42 = arith.mulf %41, %15 : vector<144x1xf32>
      %43 = vector.broadcast %42 : vector<144x1xf32> to vector<144x128xf32>
      %44 = arith.addf %14, %43 : vector<144x128xf32>
      %45 = vector.extract_strided_slice %44 {offsets = [0, 0], sizes = [72, 128], strides = [1, 1]} : vector<144x128xf32> to vector<72x128xf32>
      %46 = arith.negf %45 : vector<72x128xf32>
      %47 = math.exp %46 : vector<72x128xf32>
      %cst_16 = arith.constant 1.000000e+00 : f32
      %48 = vector.broadcast %cst_16 : f32 to vector<72x128xf32>
      %49 = arith.addf %48, %47 : vector<72x128xf32>
      %50 = arith.divf %48, %49 : vector<72x128xf32>
      %51 = vector.extract_strided_slice %44 {offsets = [72, 0], sizes = [72, 128], strides = [1, 1]} : vector<144x128xf32> to vector<72x128xf32>
      %52 = vector.broadcast %16 : vector<72x1xf32> to vector<72x128xf32>
      %53 = arith.mulf %52, %50 : vector<72x128xf32>
      %54 = arith.addf %51, %53 : vector<72x128xf32>
      %55 = arith.addf %38, %1 : f32
      %56 = vector.broadcast %55 : f32 to vector<144x1xf32>
      %57 = arith.mulf %56, %15 : vector<144x1xf32>
      %58 = vector.broadcast %57 : vector<144x1xf32> to vector<144x128xf32>
      %59 = arith.addf %14, %58 : vector<144x128xf32>
      %60 = vector.extract_strided_slice %59 {offsets = [0, 0], sizes = [72, 128], strides = [1, 1]} : vector<144x128xf32> to vector<72x128xf32>
      %61 = arith.negf %60 : vector<72x128xf32>
      %62 = math.exp %61 : vector<72x128xf32>
      %cst_17 = arith.constant 1.000000e+00 : f32
      %63 = vector.broadcast %cst_17 : f32 to vector<72x128xf32>
      %64 = arith.addf %63, %62 : vector<72x128xf32>
      %65 = arith.divf %63, %64 : vector<72x128xf32>
      %66 = vector.extract_strided_slice %59 {offsets = [72, 0], sizes = [72, 128], strides = [1, 1]} : vector<144x128xf32> to vector<72x128xf32>
      %67 = vector.broadcast %16 : vector<72x1xf32> to vector<72x128xf32>
      %68 = arith.mulf %67, %65 : vector<72x128xf32>
      %69 = arith.addf %66, %68 : vector<72x128xf32>
      %70 = vector.extract_strided_slice %arg11 {offsets = [0, 0], sizes = [32, 128], strides = [1, 1]} : vector<72x128xf32> to vector<32x128xf32>
      %71 = vector.extract_strided_slice %arg11 {offsets = [32, 0], sizes = [32, 128], strides = [1, 1]} : vector<72x128xf32> to vector<32x128xf32>
      %72 = vector.extract_strided_slice %arg11 {offsets = [64, 0], sizes = [4, 128], strides = [1, 1]} : vector<72x128xf32> to vector<4x128xf32>
      %73 = vector.extract_strided_slice %arg12 {offsets = [0, 0], sizes = [32, 128], strides = [1, 1]} : vector<72x128xf32> to vector<32x128xf32>
      %74 = vector.extract_strided_slice %arg12 {offsets = [32, 0], sizes = [32, 128], strides = [1, 1]} : vector<72x128xf32> to vector<32x128xf32>
      %75 = vector.extract_strided_slice %arg12 {offsets = [64, 0], sizes = [4, 128], strides = [1, 1]} : vector<72x128xf32> to vector<4x128xf32>
      %76 = arith.truncf %arg9 : vector<4x128xf32> to vector<4x128xbf16>
      %cst_18 = arith.constant dense<0.000000e+00> : vector<32x128xf32>
      %77 = tpu.matmul %6, %76, %cst_18 {dimension_numbers = #tpu.dot_dimension_numbers<[1], [0], [0], [1], [0, 0, 1, 1], [], []>} : vector<32x4xbf16>, vector<4x128xbf16>, vector<32x128xf32> -> vector<32x128xf32>
      %78 = arith.mulf %77, %70 : vector<32x128xf32>
      %79 = arith.addf %78, %73 : vector<32x128xf32>
      %80 = math.tanh %79 : vector<32x128xf32>
      %81 = arith.mulf %80, %80 : vector<32x128xf32>
      %cst_19 = arith.constant 1.000000e+00 : f32
      %82 = vector.broadcast %cst_19 : f32 to vector<32x128xf32>
      %83 = arith.subf %82, %81 : vector<32x128xf32>
      %84 = arith.mulf %83, %70 : vector<32x128xf32>
      %85 = arith.truncf %80 : vector<32x128xf32> to vector<32x128xbf16>
      %86 = arith.truncf %84 : vector<32x128xf32> to vector<32x128xbf16>
      %87 = tpu.concatenate %85, %86 in 0 : vector<32x128xbf16>, vector<32x128xbf16> -> vector<64x128xbf16>
      %cst_20 = arith.constant dense<0.000000e+00> : vector<160x128xf32>
      %88 = tpu.matmul %7, %87, %cst_20 {dimension_numbers = #tpu.dot_dimension_numbers<[1], [0], [0], [1], [0, 0, 1, 1], [], []>} : vector<160x64xbf16>, vector<64x128xbf16>, vector<160x128xf32> -> vector<160x128xf32>
      %89 = vector.extract_strided_slice %88 {offsets = [0, 0], sizes = [32, 128], strides = [1, 1]} : vector<160x128xf32> to vector<32x128xf32>
      %90 = arith.mulf %89, %71 : vector<32x128xf32>
      %91 = arith.addf %90, %74 : vector<32x128xf32>
      %92 = math.tanh %91 : vector<32x128xf32>
      %93 = arith.mulf %92, %92 : vector<32x128xf32>
      %cst_21 = arith.constant 1.000000e+00 : f32
      %94 = vector.broadcast %cst_21 : f32 to vector<32x128xf32>
      %95 = arith.subf %94, %93 : vector<32x128xf32>
      %96 = arith.mulf %95, %71 : vector<32x128xf32>
      %97 = vector.extract_strided_slice %88 {offsets = [32, 0], sizes = [128, 128], strides = [1, 1]} : vector<160x128xf32> to vector<128x128xf32>
      %98 = tpu.concatenate %96, %96, %96, %96 in 0 : vector<32x128xf32>, vector<32x128xf32>, vector<32x128xf32>, vector<32x128xf32> -> vector<128x128xf32>
      %99 = arith.mulf %97, %98 : vector<128x128xf32>
      %100 = arith.truncf %92 : vector<32x128xf32> to vector<32x128xbf16>
      %101 = arith.truncf %99 : vector<128x128xf32> to vector<128x128xbf16>
      %102 = tpu.concatenate %100, %101 in 0 : vector<32x128xbf16>, vector<128x128xbf16> -> vector<160x128xbf16>
      %cst_22 = arith.constant dense<0.000000e+00> : vector<8x128xf32>
      %103 = tpu.matmul %8, %102, %cst_22 {dimension_numbers = #tpu.dot_dimension_numbers<[1], [0], [0], [1], [0, 0, 1, 1], [], []>} : vector<8x160xbf16>, vector<160x128xbf16>, vector<8x128xf32> -> vector<8x128xf32>
      %104 = vector.extract_strided_slice %103 {offsets = [0, 0], sizes = [4, 128], strides = [1, 1]} : vector<8x128xf32> to vector<4x128xf32>
      %105 = arith.mulf %104, %72 : vector<4x128xf32>
      %106 = arith.addf %105, %75 : vector<4x128xf32>
      %107 = vector.extract_strided_slice %103 {offsets = [4, 0], sizes = [4, 128], strides = [1, 1]} : vector<8x128xf32> to vector<4x128xf32>
      %108 = arith.mulf %72, %107 : vector<4x128xf32>
      %cst_23 = arith.constant dense<0.000000e+00> : vector<128xf32>
      %109 = vector.multi_reduction <add>, %108, %cst_23 [0] : vector<4x128xf32> to vector<128xf32>
      %110 = vector.shape_cast %109 : vector<128xf32> to vector<1x128xf32>
      %cst_24 = arith.constant 0.000000e+00 : f32
      %111 = vector.broadcast %cst_24 : f32 to vector<1x128xf32>
      %112 = arith.subf %111, %110 : vector<1x128xf32>
      %cst_25 = arith.constant 5.000000e-01 : f32
      %113 = arith.mulf %cst_25, %1 : f32
      %114 = vector.broadcast %113 : f32 to vector<4x128xf32>
      %115 = arith.mulf %114, %106 : vector<4x128xf32>
      %116 = arith.addf %arg9, %115 : vector<4x128xf32>
      %117 = vector.extract_strided_slice %50 {offsets = [0, 0], sizes = [32, 128], strides = [1, 1]} : vector<72x128xf32> to vector<32x128xf32>
      %118 = vector.extract_strided_slice %50 {offsets = [32, 0], sizes = [32, 128], strides = [1, 1]} : vector<72x128xf32> to vector<32x128xf32>
      %119 = vector.extract_strided_slice %50 {offsets = [64, 0], sizes = [4, 128], strides = [1, 1]} : vector<72x128xf32> to vector<4x128xf32>
      %120 = vector.extract_strided_slice %54 {offsets = [0, 0], sizes = [32, 128], strides = [1, 1]} : vector<72x128xf32> to vector<32x128xf32>
      %121 = vector.extract_strided_slice %54 {offsets = [32, 0], sizes = [32, 128], strides = [1, 1]} : vector<72x128xf32> to vector<32x128xf32>
      %122 = vector.extract_strided_slice %54 {offsets = [64, 0], sizes = [4, 128], strides = [1, 1]} : vector<72x128xf32> to vector<4x128xf32>
      %123 = arith.truncf %116 : vector<4x128xf32> to vector<4x128xbf16>
      %cst_26 = arith.constant dense<0.000000e+00> : vector<32x128xf32>
      %124 = tpu.matmul %6, %123, %cst_26 {dimension_numbers = #tpu.dot_dimension_numbers<[1], [0], [0], [1], [0, 0, 1, 1], [], []>} : vector<32x4xbf16>, vector<4x128xbf16>, vector<32x128xf32> -> vector<32x128xf32>
      %125 = arith.mulf %124, %117 : vector<32x128xf32>
      %126 = arith.addf %125, %120 : vector<32x128xf32>
      %127 = math.tanh %126 : vector<32x128xf32>
      %128 = arith.mulf %127, %127 : vector<32x128xf32>
      %cst_27 = arith.constant 1.000000e+00 : f32
      %129 = vector.broadcast %cst_27 : f32 to vector<32x128xf32>
      %130 = arith.subf %129, %128 : vector<32x128xf32>
      %131 = arith.mulf %130, %117 : vector<32x128xf32>
      %132 = arith.truncf %127 : vector<32x128xf32> to vector<32x128xbf16>
      %133 = arith.truncf %131 : vector<32x128xf32> to vector<32x128xbf16>
      %134 = tpu.concatenate %132, %133 in 0 : vector<32x128xbf16>, vector<32x128xbf16> -> vector<64x128xbf16>
      %cst_28 = arith.constant dense<0.000000e+00> : vector<160x128xf32>
      %135 = tpu.matmul %7, %134, %cst_28 {dimension_numbers = #tpu.dot_dimension_numbers<[1], [0], [0], [1], [0, 0, 1, 1], [], []>} : vector<160x64xbf16>, vector<64x128xbf16>, vector<160x128xf32> -> vector<160x128xf32>
      %136 = vector.extract_strided_slice %135 {offsets = [0, 0], sizes = [32, 128], strides = [1, 1]} : vector<160x128xf32> to vector<32x128xf32>
      %137 = arith.mulf %136, %118 : vector<32x128xf32>
      %138 = arith.addf %137, %121 : vector<32x128xf32>
      %139 = math.tanh %138 : vector<32x128xf32>
      %140 = arith.mulf %139, %139 : vector<32x128xf32>
      %cst_29 = arith.constant 1.000000e+00 : f32
      %141 = vector.broadcast %cst_29 : f32 to vector<32x128xf32>
      %142 = arith.subf %141, %140 : vector<32x128xf32>
      %143 = arith.mulf %142, %118 : vector<32x128xf32>
      %144 = vector.extract_strided_slice %135 {offsets = [32, 0], sizes = [128, 128], strides = [1, 1]} : vector<160x128xf32> to vector<128x128xf32>
      %145 = tpu.concatenate %143, %143, %143, %143 in 0 : vector<32x128xf32>, vector<32x128xf32>, vector<32x128xf32>, vector<32x128xf32> -> vector<128x128xf32>
      %146 = arith.mulf %144, %145 : vector<128x128xf32>
      %147 = arith.truncf %139 : vector<32x128xf32> to vector<32x128xbf16>
      %148 = arith.truncf %146 : vector<128x128xf32> to vector<128x128xbf16>
      %149 = tpu.concatenate %147, %148 in 0 : vector<32x128xbf16>, vector<128x128xbf16> -> vector<160x128xbf16>
      %cst_30 = arith.constant dense<0.000000e+00> : vector<8x128xf32>
      %150 = tpu.matmul %8, %149, %cst_30 {dimension_numbers = #tpu.dot_dimension_numbers<[1], [0], [0], [1], [0, 0, 1, 1], [], []>} : vector<8x160xbf16>, vector<160x128xbf16>, vector<8x128xf32> -> vector<8x128xf32>
      %151 = vector.extract_strided_slice %150 {offsets = [0, 0], sizes = [4, 128], strides = [1, 1]} : vector<8x128xf32> to vector<4x128xf32>
      %152 = arith.mulf %151, %119 : vector<4x128xf32>
      %153 = arith.addf %152, %122 : vector<4x128xf32>
      %154 = vector.extract_strided_slice %150 {offsets = [4, 0], sizes = [4, 128], strides = [1, 1]} : vector<8x128xf32> to vector<4x128xf32>
      %155 = arith.mulf %119, %154 : vector<4x128xf32>
      %cst_31 = arith.constant dense<0.000000e+00> : vector<128xf32>
      %156 = vector.multi_reduction <add>, %155, %cst_31 [0] : vector<4x128xf32> to vector<128xf32>
      %157 = vector.shape_cast %156 : vector<128xf32> to vector<1x128xf32>
      %cst_32 = arith.constant 0.000000e+00 : f32
      %158 = vector.broadcast %cst_32 : f32 to vector<1x128xf32>
      %159 = arith.subf %158, %157 : vector<1x128xf32>
      %cst_33 = arith.constant 5.000000e-01 : f32
      %160 = arith.mulf %cst_33, %1 : f32
      %161 = vector.broadcast %160 : f32 to vector<4x128xf32>
      %162 = arith.mulf %161, %153 : vector<4x128xf32>
      %163 = arith.addf %arg9, %162 : vector<4x128xf32>
      %164 = vector.extract_strided_slice %50 {offsets = [0, 0], sizes = [32, 128], strides = [1, 1]} : vector<72x128xf32> to vector<32x128xf32>
      %165 = vector.extract_strided_slice %50 {offsets = [32, 0], sizes = [32, 128], strides = [1, 1]} : vector<72x128xf32> to vector<32x128xf32>
      %166 = vector.extract_strided_slice %50 {offsets = [64, 0], sizes = [4, 128], strides = [1, 1]} : vector<72x128xf32> to vector<4x128xf32>
      %167 = vector.extract_strided_slice %54 {offsets = [0, 0], sizes = [32, 128], strides = [1, 1]} : vector<72x128xf32> to vector<32x128xf32>
      %168 = vector.extract_strided_slice %54 {offsets = [32, 0], sizes = [32, 128], strides = [1, 1]} : vector<72x128xf32> to vector<32x128xf32>
      %169 = vector.extract_strided_slice %54 {offsets = [64, 0], sizes = [4, 128], strides = [1, 1]} : vector<72x128xf32> to vector<4x128xf32>
      %170 = arith.truncf %163 : vector<4x128xf32> to vector<4x128xbf16>
      %cst_34 = arith.constant dense<0.000000e+00> : vector<32x128xf32>
      %171 = tpu.matmul %6, %170, %cst_34 {dimension_numbers = #tpu.dot_dimension_numbers<[1], [0], [0], [1], [0, 0, 1, 1], [], []>} : vector<32x4xbf16>, vector<4x128xbf16>, vector<32x128xf32> -> vector<32x128xf32>
      %172 = arith.mulf %171, %164 : vector<32x128xf32>
      %173 = arith.addf %172, %167 : vector<32x128xf32>
      %174 = math.tanh %173 : vector<32x128xf32>
      %175 = arith.mulf %174, %174 : vector<32x128xf32>
      %cst_35 = arith.constant 1.000000e+00 : f32
      %176 = vector.broadcast %cst_35 : f32 to vector<32x128xf32>
      %177 = arith.subf %176, %175 : vector<32x128xf32>
      %178 = arith.mulf %177, %164 : vector<32x128xf32>
      %179 = arith.truncf %174 : vector<32x128xf32> to vector<32x128xbf16>
      %180 = arith.truncf %178 : vector<32x128xf32> to vector<32x128xbf16>
      %181 = tpu.concatenate %179, %180 in 0 : vector<32x128xbf16>, vector<32x128xbf16> -> vector<64x128xbf16>
      %cst_36 = arith.constant dense<0.000000e+00> : vector<160x128xf32>
      %182 = tpu.matmul %7, %181, %cst_36 {dimension_numbers = #tpu.dot_dimension_numbers<[1], [0], [0], [1], [0, 0, 1, 1], [], []>} : vector<160x64xbf16>, vector<64x128xbf16>, vector<160x128xf32> -> vector<160x128xf32>
      %183 = vector.extract_strided_slice %182 {offsets = [0, 0], sizes = [32, 128], strides = [1, 1]} : vector<160x128xf32> to vector<32x128xf32>
      %184 = arith.mulf %183, %165 : vector<32x128xf32>
      %185 = arith.addf %184, %168 : vector<32x128xf32>
      %186 = math.tanh %185 : vector<32x128xf32>
      %187 = arith.mulf %186, %186 : vector<32x128xf32>
      %cst_37 = arith.constant 1.000000e+00 : f32
      %188 = vector.broadcast %cst_37 : f32 to vector<32x128xf32>
      %189 = arith.subf %188, %187 : vector<32x128xf32>
      %190 = arith.mulf %189, %165 : vector<32x128xf32>
      %191 = vector.extract_strided_slice %182 {offsets = [32, 0], sizes = [128, 128], strides = [1, 1]} : vector<160x128xf32> to vector<128x128xf32>
      %192 = tpu.concatenate %190, %190, %190, %190 in 0 : vector<32x128xf32>, vector<32x128xf32>, vector<32x128xf32>, vector<32x128xf32> -> vector<128x128xf32>
      %193 = arith.mulf %191, %192 : vector<128x128xf32>
      %194 = arith.truncf %186 : vector<32x128xf32> to vector<32x128xbf16>
      %195 = arith.truncf %193 : vector<128x128xf32> to vector<128x128xbf16>
      %196 = tpu.concatenate %194, %195 in 0 : vector<32x128xbf16>, vector<128x128xbf16> -> vector<160x128xbf16>
      %cst_38 = arith.constant dense<0.000000e+00> : vector<8x128xf32>
      %197 = tpu.matmul %8, %196, %cst_38 {dimension_numbers = #tpu.dot_dimension_numbers<[1], [0], [0], [1], [0, 0, 1, 1], [], []>} : vector<8x160xbf16>, vector<160x128xbf16>, vector<8x128xf32> -> vector<8x128xf32>
      %198 = vector.extract_strided_slice %197 {offsets = [0, 0], sizes = [4, 128], strides = [1, 1]} : vector<8x128xf32> to vector<4x128xf32>
      %199 = arith.mulf %198, %166 : vector<4x128xf32>
      %200 = arith.addf %199, %169 : vector<4x128xf32>
      %201 = vector.extract_strided_slice %197 {offsets = [4, 0], sizes = [4, 128], strides = [1, 1]} : vector<8x128xf32> to vector<4x128xf32>
      %202 = arith.mulf %166, %201 : vector<4x128xf32>
      %cst_39 = arith.constant dense<0.000000e+00> : vector<128xf32>
      %203 = vector.multi_reduction <add>, %202, %cst_39 [0] : vector<4x128xf32> to vector<128xf32>
      %204 = vector.shape_cast %203 : vector<128xf32> to vector<1x128xf32>
      %cst_40 = arith.constant 0.000000e+00 : f32
      %205 = vector.broadcast %cst_40 : f32 to vector<1x128xf32>
      %206 = arith.subf %205, %204 : vector<1x128xf32>
      %207 = vector.broadcast %1 : f32 to vector<4x128xf32>
      %208 = arith.mulf %207, %200 : vector<4x128xf32>
      %209 = arith.addf %arg9, %208 : vector<4x128xf32>
      %210 = vector.extract_strided_slice %65 {offsets = [0, 0], sizes = [32, 128], strides = [1, 1]} : vector<72x128xf32> to vector<32x128xf32>
      %211 = vector.extract_strided_slice %65 {offsets = [32, 0], sizes = [32, 128], strides = [1, 1]} : vector<72x128xf32> to vector<32x128xf32>
      %212 = vector.extract_strided_slice %65 {offsets = [64, 0], sizes = [4, 128], strides = [1, 1]} : vector<72x128xf32> to vector<4x128xf32>
      %213 = vector.extract_strided_slice %69 {offsets = [0, 0], sizes = [32, 128], strides = [1, 1]} : vector<72x128xf32> to vector<32x128xf32>
      %214 = vector.extract_strided_slice %69 {offsets = [32, 0], sizes = [32, 128], strides = [1, 1]} : vector<72x128xf32> to vector<32x128xf32>
      %215 = vector.extract_strided_slice %69 {offsets = [64, 0], sizes = [4, 128], strides = [1, 1]} : vector<72x128xf32> to vector<4x128xf32>
      %216 = arith.truncf %209 : vector<4x128xf32> to vector<4x128xbf16>
      %cst_41 = arith.constant dense<0.000000e+00> : vector<32x128xf32>
      %217 = tpu.matmul %6, %216, %cst_41 {dimension_numbers = #tpu.dot_dimension_numbers<[1], [0], [0], [1], [0, 0, 1, 1], [], []>} : vector<32x4xbf16>, vector<4x128xbf16>, vector<32x128xf32> -> vector<32x128xf32>
      %218 = arith.mulf %217, %210 : vector<32x128xf32>
      %219 = arith.addf %218, %213 : vector<32x128xf32>
      %220 = math.tanh %219 : vector<32x128xf32>
      %221 = arith.mulf %220, %220 : vector<32x128xf32>
      %cst_42 = arith.constant 1.000000e+00 : f32
      %222 = vector.broadcast %cst_42 : f32 to vector<32x128xf32>
      %223 = arith.subf %222, %221 : vector<32x128xf32>
      %224 = arith.mulf %223, %210 : vector<32x128xf32>
      %225 = arith.truncf %220 : vector<32x128xf32> to vector<32x128xbf16>
      %226 = arith.truncf %224 : vector<32x128xf32> to vector<32x128xbf16>
      %227 = tpu.concatenate %225, %226 in 0 : vector<32x128xbf16>, vector<32x128xbf16> -> vector<64x128xbf16>
      %cst_43 = arith.constant dense<0.000000e+00> : vector<160x128xf32>
      %228 = tpu.matmul %7, %227, %cst_43 {dimension_numbers = #tpu.dot_dimension_numbers<[1], [0], [0], [1], [0, 0, 1, 1], [], []>} : vector<160x64xbf16>, vector<64x128xbf16>, vector<160x128xf32> -> vector<160x128xf32>
      %229 = vector.extract_strided_slice %228 {offsets = [0, 0], sizes = [32, 128], strides = [1, 1]} : vector<160x128xf32> to vector<32x128xf32>
      %230 = arith.mulf %229, %211 : vector<32x128xf32>
      %231 = arith.addf %230, %214 : vector<32x128xf32>
      %232 = math.tanh %231 : vector<32x128xf32>
      %233 = arith.mulf %232, %232 : vector<32x128xf32>
      %cst_44 = arith.constant 1.000000e+00 : f32
      %234 = vector.broadcast %cst_44 : f32 to vector<32x128xf32>
      %235 = arith.subf %234, %233 : vector<32x128xf32>
      %236 = arith.mulf %235, %211 : vector<32x128xf32>
      %237 = vector.extract_strided_slice %228 {offsets = [32, 0], sizes = [128, 128], strides = [1, 1]} : vector<160x128xf32> to vector<128x128xf32>
      %238 = tpu.concatenate %236, %236, %236, %236 in 0 : vector<32x128xf32>, vector<32x128xf32>, vector<32x128xf32>, vector<32x128xf32> -> vector<128x128xf32>
      %239 = arith.mulf %237, %238 : vector<128x128xf32>
      %240 = arith.truncf %232 : vector<32x128xf32> to vector<32x128xbf16>
      %241 = arith.truncf %239 : vector<128x128xf32> to vector<128x128xbf16>
      %242 = tpu.concatenate %240, %241 in 0 : vector<32x128xbf16>, vector<128x128xbf16> -> vector<160x128xbf16>
      %cst_45 = arith.constant dense<0.000000e+00> : vector<8x128xf32>
      %243 = tpu.matmul %8, %242, %cst_45 {dimension_numbers = #tpu.dot_dimension_numbers<[1], [0], [0], [1], [0, 0, 1, 1], [], []>} : vector<8x160xbf16>, vector<160x128xbf16>, vector<8x128xf32> -> vector<8x128xf32>
      %244 = vector.extract_strided_slice %243 {offsets = [0, 0], sizes = [4, 128], strides = [1, 1]} : vector<8x128xf32> to vector<4x128xf32>
      %245 = arith.mulf %244, %212 : vector<4x128xf32>
      %246 = arith.addf %245, %215 : vector<4x128xf32>
      %247 = vector.extract_strided_slice %243 {offsets = [4, 0], sizes = [4, 128], strides = [1, 1]} : vector<8x128xf32> to vector<4x128xf32>
      %248 = arith.mulf %212, %247 : vector<4x128xf32>
      %cst_46 = arith.constant dense<0.000000e+00> : vector<128xf32>
      %249 = vector.multi_reduction <add>, %248, %cst_46 [0] : vector<4x128xf32> to vector<128xf32>
      %250 = vector.shape_cast %249 : vector<128xf32> to vector<1x128xf32>
      %cst_47 = arith.constant 0.000000e+00 : f32
      %251 = vector.broadcast %cst_47 : f32 to vector<1x128xf32>
      %252 = arith.subf %251, %250 : vector<1x128xf32>
      %cst_48 = arith.constant 6.000000e+00 : f32
      %253 = arith.divf %1, %cst_48 : f32
      %254 = arith.addf %153, %200 : vector<4x128xf32>
      %cst_49 = arith.constant 2.000000e+00 : f32
      %255 = vector.broadcast %cst_49 : f32 to vector<4x128xf32>
      %256 = arith.mulf %255, %254 : vector<4x128xf32>
      %257 = arith.addf %106, %256 : vector<4x128xf32>
      %258 = arith.addf %257, %246 : vector<4x128xf32>
      %259 = vector.broadcast %253 : f32 to vector<4x128xf32>
      %260 = arith.mulf %259, %258 : vector<4x128xf32>
      %261 = arith.addf %arg9, %260 : vector<4x128xf32>
      %cst_50 = arith.constant 6.000000e+00 : f32
      %262 = arith.divf %1, %cst_50 : f32
      %263 = arith.addf %159, %206 : vector<1x128xf32>
      %cst_51 = arith.constant 2.000000e+00 : f32
      %264 = vector.broadcast %cst_51 : f32 to vector<1x128xf32>
      %265 = arith.mulf %264, %263 : vector<1x128xf32>
      %266 = arith.addf %112, %265 : vector<1x128xf32>
      %267 = arith.addf %266, %252 : vector<1x128xf32>
      %268 = vector.broadcast %262 : f32 to vector<1x128xf32>
      %269 = arith.mulf %268, %267 : vector<1x128xf32>
      %270 = arith.addf %arg10, %269 : vector<1x128xf32>
      scf.yield %261, %270, %65, %69 : vector<4x128xf32>, vector<1x128xf32>, vector<72x128xf32>, vector<72x128xf32>
    }
    %c16_i32_11 = arith.constant 16 : i32
    %cst_12 = arith.constant 0.000000e+00 : f32
    %33 = vector.broadcast %cst_12 : f32 to vector<3x128xf32>
    %34 = tpu.concatenate %32#0, %32#1, %33 in 0 : vector<4x128xf32>, vector<1x128xf32>, vector<3x128xf32> -> vector<8x128xf32>
    %c0_13 = arith.constant 0 : index
    %c0_14 = arith.constant 0 : index
    %35 = vector.load %arg7[%c0_13, %c0_14] : memref<8x128xf32, #tpu.memory_space<vmem>>, vector<8x128xf32>
    tpu.vector_store %arg7[%c0_13, %c0_14], %34 {strides = array<i32>} : memref<8x128xf32, #tpu.memory_space<vmem>>, vector<8x128xf32>,
    return
  }
  func.func @transform_0(%arg0: i32) -> i32 {
    %c0_i32 = arith.constant 0 : i32
    %c0_i32_0 = arith.constant 0 : i32
    return %c0_i32 : i32
  }
  func.func @transform_1(%arg0: i32) -> (i32, i32) {
    %c0_i32 = arith.constant 0 : i32
    %c0_i32_0 = arith.constant 0 : i32
    return %c0_i32, %arg0 : i32, i32
  }
  func.func @transform_2(%arg0: i32) -> (i32, i32) {
    %c0_i32 = arith.constant 0 : i32
    %c0_i32_0 = arith.constant 0 : i32
    %c0_i32_1 = arith.constant 0 : i32
    return %c0_i32, %c0_i32_0 : i32, i32
  }
  func.func @transform_3(%arg0: i32) -> (i32, i32) {
    %c0_i32 = arith.constant 0 : i32
    %c0_i32_0 = arith.constant 0 : i32
    %c0_i32_1 = arith.constant 0 : i32
    return %c0_i32, %c0_i32_0 : i32, i32
  }
  func.func @transform_4(%arg0: i32) -> (i32, i32) {
    %c0_i32 = arith.constant 0 : i32
    %c0_i32_0 = arith.constant 0 : i32
    %c0_i32_1 = arith.constant 0 : i32
    return %c0_i32, %c0_i32_0 : i32, i32
  }
  func.func @transform_5(%arg0: i32) -> (i32, i32) {
    %c0_i32 = arith.constant 0 : i32
    %c0_i32_0 = arith.constant 0 : i32
    %c0_i32_1 = arith.constant 0 : i32
    return %c0_i32, %c0_i32_0 : i32, i32
  }
  func.func @transform_6(%arg0: i32) -> (i32, i32) {
    %c0_i32 = arith.constant 0 : i32
    %c0_i32_0 = arith.constant 0 : i32
    return %c0_i32, %arg0 : i32, i32
  }
}

</mosaic_0001>

<llo_original>
// kernel: tpu_custom_call.1
$region0: #{tpu_custom_call.1}
  #allocation0 [shape = 'u32[]', space=smem, size = 0x4, offset = 0x4, fixed_abs, tag = 'smem constant byte address 0x4 - core index']
  #allocation1 [shape = 'u32[144,128]{1,0:T(1,128)}', space=vmem, size = 0x12000, scoped, tag = 'internal scratch']
  %s0 = inlined_call_operand.vmem [shape: f32[2], index: 0, kind: input, shape index: {}]
  %s1 = inlined_call_operand.vmem [shape: f32[16,256], index: 1, kind: input, shape index: {}]
  %s2 = inlined_call_operand.vmem [shape: bf16[32,4], index: 2, kind: input, shape index: {}]
  %s3 = inlined_call_operand.vmem [shape: bf16[160,64], index: 3, kind: input, shape index: {}]
  %s4 = inlined_call_operand.vmem [shape: bf16[8,160], index: 4, kind: input, shape index: {}]
  %s5 = inlined_call_operand.vmem [shape: f32[144,11], index: 5, kind: input, shape index: {}]
  %s6 = inlined_call_operand.hbm [shape: f32[8,256], index: 6, kind: output, shape index: {}]
  %s7 = sld [smem:[#allocation0]]
  $region106: #{tpu_custom_call.1} parent=0
    _
  %s9 = ssub.s32 1, %s7
  %s10 = scalar_select 0, %s9, %s7
  $region1: #{tpu_custom_call.1} parent=0
    #allocation2 [shape = 'u8[512]{0}', space=smem, size = 0x200, scoped, tag = 'input window, operand 0, single buffered']
    #allocation3 [shape = 's32[2]{0}', space=sflag, size = 0x8, scoped, tag = 'scoped memory for tpu_custom_call.1']
    #allocation4 [shape = 's32[2]{0}', space=sflag, size = 0x8, scoped, tag = 'scoped memory for tpu_custom_call.1']
    #allocation5 [shape = 'u8[16384]{0}', space=vmem, size = 0x4000, scoped, tag = 'input window, operand 1']
    #allocation6 [shape = 'u8[8192]{0}', space=vmem, size = 0x2000, scoped, tag = 'output window, operand 0']
    %11 = vsyncpa [#allocation4], 0
    %12 = vsyncpa [#allocation3], 0
    %s13 = scalar_lea.sflag [#allocation3], 1
    %14 = vsyncpa %s13, 0
    loop: start=0, step=1, limit=4
    $region2: #{tpu_custom_call.1} parent=1 // loop_pre_header
      _
    $region3: #{tpu_custom_call.1} parent=1 // loop_header
      %s16 = sphi 0, %s20
      %p17 = scmp.ge.s32.totalorder %s16, 4
      %s24 = sphi 0, %s24
      %s26 = sphi 0, %s24
      %s27 = sphi 0, %s26
      %s41 = sphi 0, %s27
      %s47 = sphi 0, %s49
      %s50 = sphi 0, %s47
      %s51 = sphi 0, %s50
      %s67 = sphi 0, %s51
      %s71 = sphi 0, %s71
      %s73 = sphi 0, %s71
      %s74 = sphi 0, %s73
      %s88 = sphi 0, %s74
      %s92 = sphi 0, %s92
      %s94 = sphi 0, %s92
      %s95 = sphi 0, %s94
      %s109 = sphi 0, %s95
      %s113 = sphi 0, %s113
      %s115 = sphi 0, %s113
      %s116 = sphi 0, %s115
      %s130 = sphi 0, %s116
      %s134 = sphi 0, %s134
      %s136 = sphi 0, %s134
      %s137 = sphi 0, %s136
      %s151 = sphi 0, %s137
      %s157 = sphi 0, %s159
      %s160 = sphi 0, %s157
      %s161 = sphi 0, %s160
      %s177 = sphi 0, %s161
    $region4: #{tpu_custom_call.1} parent=1 // loop_header_branch
      %19 = sbr.rel (%p17) target = $region8
    $region5: #{tpu_custom_call.1} parent=1 // loop_body
      %s21 = ssub.s32 %s16, 1
      %s22 = ssub.s32 %s16, 2
      %s23 = sadd.s32 %s16, 1
      %s25 = sadd.s32 %s24, 1
      %p28 = scmp.eq.s32.totalorder %s16, 1
      %p29 = scmp.ne.s32.totalorder %s24, %s26
      %p30 = scmp.eq.s32.totalorder %s16, 0
      %p31 = por %p29, %p30
      %p32 = scmp.ne.s32.totalorder %s24, %s26
      %p33 = scmp.eq.s32.totalorder %s21, 1
      %p34 = por %p32, %p33
      %p35 = scmp.ne.s32.totalorder %s26, %s27
      %p36 = scmp.eq.s32.totalorder %s21, 0
      %p37 = por %p35, %p36
      %p38 = scmp.ne.s32.totalorder %s26, %s27
      %p39 = scmp.eq.s32.totalorder %s22, 1
      %p40 = por %p38, %p39
      %p42 = scmp.ne.s32.totalorder %s27, %s41
      %p43 = scmp.eq.s32.totalorder %s22, 0
      %p44 = por %p42, %p43
      %s45 = ssub.s32 %s16, %s23
      %p46 = scmp.eq.s32.totalorder %s45, 0
      %s48 = sadd.s32 %s47, 1
      %s49 = scalar_select %p46, %s47, %s48
      %p52 = pneg %p46
      %p53 = scmp.eq.s32.totalorder %s16, 1
      %p54 = por %p52, %p53
      %p55 = scmp.ne.s32.totalorder %s47, %s50
      %p56 = scmp.eq.s32.totalorder %s16, 0
      %p57 = por %p55, %p56
      %p58 = scmp.ne.s32.totalorder %s47, %s50
      %p59 = scmp.eq.s32.totalorder %s21, 1
      %p60 = por %p58, %p59
      %p61 = scmp.ne.s32.totalorder %s50, %s51
      %p62 = scmp.eq.s32.totalorder %s21, 0
      %p63 = por %p61, %p62
      %p64 = scmp.ne.s32.totalorder %s50, %s51
      %p65 = scmp.eq.s32.totalorder %s22, 1
      %p66 = por %p64, %p65
      %p68 = scmp.ne.s32.totalorder %s51, %s67
      %p69 = scmp.eq.s32.totalorder %s22, 0
      %p70 = por %p68, %p69
      %s72 = sadd.s32 %s71, 1
      %p75 = scmp.eq.s32.totalorder %s16, 1
      %p76 = scmp.ne.s32.totalorder %s71, %s73
      %p77 = scmp.eq.s32.totalorder %s16, 0
      %p78 = por %p76, %p77
      %p79 = scmp.ne.s32.totalorder %s71, %s73
      %p80 = scmp.eq.s32.totalorder %s21, 1
      %p81 = por %p79, %p80
      %p82 = scmp.ne.s32.totalorder %s73, %s74
      %p83 = scmp.eq.s32.totalorder %s21, 0
      %p84 = por %p82, %p83
      %p85 = scmp.ne.s32.totalorder %s73, %s74
      %p86 = scmp.eq.s32.totalorder %s22, 1
      %p87 = por %p85, %p86
      %p89 = scmp.ne.s32.totalorder %s74, %s88
      %p90 = scmp.eq.s32.totalorder %s22, 0
      %p91 = por %p89, %p90
      %s93 = sadd.s32 %s92, 1
      %p96 = scmp.eq.s32.totalorder %s16, 1
      %p97 = scmp.ne.s32.totalorder %s92, %s94
      %p98 = scmp.eq.s32.totalorder %s16, 0
      %p99 = por %p97, %p98
      %p100 = scmp.ne.s32.totalorder %s92, %s94
      %p101 = scmp.eq.s32.totalorder %s21, 1
      %p102 = por %p100, %p101
      %p103 = scmp.ne.s32.totalorder %s94, %s95
      %p104 = scmp.eq.s32.totalorder %s21, 0
      %p105 = por %p103, %p104
      %p106 = scmp.ne.s32.totalorder %s94, %s95
      %p107 = scmp.eq.s32.totalorder %s22, 1
      %p108 = por %p106, %p107
      %p110 = scmp.ne.s32.totalorder %s95, %s109
      %p111 = scmp.eq.s32.totalorder %s22, 0
      %p112 = por %p110, %p111
      %s114 = sadd.s32 %s113, 1
      %p117 = scmp.eq.s32.totalorder %s16, 1
      %p118 = scmp.ne.s32.totalorder %s113, %s115
      %p119 = scmp.eq.s32.totalorder %s16, 0
      %p120 = por %p118, %p119
      %p121 = scmp.ne.s32.totalorder %s113, %s115
      %p122 = scmp.eq.s32.totalorder %s21, 1
      %p123 = por %p121, %p122
      %p124 = scmp.ne.s32.totalorder %s115, %s116
      %p125 = scmp.eq.s32.totalorder %s21, 0
      %p126 = por %p124, %p125
      %p127 = scmp.ne.s32.totalorder %s115, %s116
      %p128 = scmp.eq.s32.totalorder %s22, 1
      %p129 = por %p127, %p128
      %p131 = scmp.ne.s32.totalorder %s116, %s130
      %p132 = scmp.eq.s32.totalorder %s22, 0
      %p133 = por %p131, %p132
      %s135 = sadd.s32 %s134, 1
      %p138 = scmp.eq.s32.totalorder %s16, 1
      %p139 = scmp.ne.s32.totalorder %s134, %s136
      %p140 = scmp.eq.s32.totalorder %s16, 0
      %p141 = por %p139, %p140
      %p142 = scmp.ne.s32.totalorder %s134, %s136
      %p143 = scmp.eq.s32.totalorder %s21, 1
      %p144 = por %p142, %p143
      %p145 = scmp.ne.s32.totalorder %s136, %s137
      %p146 = scmp.eq.s32.totalorder %s21, 0
      %p147 = por %p145, %p146
      %p148 = scmp.ne.s32.totalorder %s136, %s137
      %p149 = scmp.eq.s32.totalorder %s22, 1
      %p150 = por %p148, %p149
      %p152 = scmp.ne.s32.totalorder %s137, %s151
      %p153 = scmp.eq.s32.totalorder %s22, 0
      %p154 = por %p152, %p153
      %s155 = ssub.s32 %s16, %s23
      %p156 = scmp.eq.s32.totalorder %s155, 0
      %s158 = sadd.s32 %s157, 1
      %s159 = scalar_select %p156, %s157, %s158
      %p162 = pneg %p156
      %p163 = scmp.eq.s32.totalorder %s16, 1
      %p164 = por %p162, %p163
      %p165 = scmp.ne.s32.totalorder %s157, %s160
      %p166 = scmp.eq.s32.totalorder %s16, 0
      %p167 = por %p165, %p166
      %p168 = scmp.ne.s32.totalorder %s157, %s160
      %p169 = scmp.eq.s32.totalorder %s21, 1
      %p170 = por %p168, %p169
      %p171 = scmp.ne.s32.totalorder %s160, %s161
      %p172 = scmp.eq.s32.totalorder %s21, 0
      %p173 = por %p171, %p172
      %p174 = scmp.ne.s32.totalorder %s160, %s161
      %p175 = scmp.eq.s32.totalorder %s22, 1
      %p176 = por %p174, %p175
      %p178 = scmp.ne.s32.totalorder %s161, %s177
      %p179 = scmp.eq.s32.totalorder %s22, 0
      %p180 = por %p178, %p179
      %p181 = scmp.le.s32.totalorder 1, %s16
      %p182 = scmp.lt.s32.totalorder %s16, 3
      %p183 = pnand %p181, %p182
      %p184 = pneg %p183
      // Predicated region
      $region9: #{tpu_custom_call.1} parent=5 // pred_check
        _
      $region10: #{tpu_custom_call.1} parent=5 // pred_check_branch
        %186 = sbr.rel (%p183) target = $region12
      $region11: #{tpu_custom_call.1} parent=5 // pred_region
        %s187 = ssub.s32 %s16, 1
        // Predicated region
        $region13: #{tpu_custom_call.1} parent=11 // pred_check
          %p188 = pneg %p37
        $region14: #{tpu_custom_call.1} parent=11 // pred_check_branch
          %190 = sbr.rel (%p188) target = $region16
        $region15: #{tpu_custom_call.1} parent=11 // pred_region
          %s192 = ssub.s32 16, 16
          %193 = vsyncadd [#allocation4], %s192
          %s195 = sshll.u32 %s0, 4
          %s196 = int_to_ptr.vmem [resolvable:$true] %s195
          %198 = dma.vmem_to_smem %s196, 16, [#allocation2], [#allocation4]
        $region16: #{tpu_custom_call.1} parent=11 // pred_fallthru
          _
        // Predicated region
        $region17: #{tpu_custom_call.1} parent=11 // pred_check
          %p199 = pneg %p84
        $region18: #{tpu_custom_call.1} parent=11 // pred_check_branch
          %201 = sbr.rel (%p199) target = $region20
        $region19: #{tpu_custom_call.1} parent=11 // pred_region
          _
        $region20: #{tpu_custom_call.1} parent=11 // pred_fallthru
          _
        // Predicated region
        $region21: #{tpu_custom_call.1} parent=11 // pred_check
          %p202 = pneg %p105
        $region22: #{tpu_custom_call.1} parent=11 // pred_check_branch
          %204 = sbr.rel (%p202) target = $region24
        $region23: #{tpu_custom_call.1} parent=11 // pred_region
          _
        $region24: #{tpu_custom_call.1} parent=11 // pred_fallthru
          _
        // Predicated region
        $region25: #{tpu_custom_call.1} parent=11 // pred_check
          %p205 = pneg %p126
        $region26: #{tpu_custom_call.1} parent=11 // pred_check_branch
          %207 = sbr.rel (%p205) target = $region28
        $region27: #{tpu_custom_call.1} parent=11 // pred_region
          _
        $region28: #{tpu_custom_call.1} parent=11 // pred_fallthru
          _
        // Predicated region
        $region29: #{tpu_custom_call.1} parent=11 // pred_check
          %p208 = pneg %p147
        $region30: #{tpu_custom_call.1} parent=11 // pred_check_branch
          %210 = sbr.rel (%p208) target = $region32
        $region31: #{tpu_custom_call.1} parent=11 // pred_region
          _
        $region32: #{tpu_custom_call.1} parent=11 // pred_fallthru
          _
      $region12: #{tpu_custom_call.1} parent=5 // pred_fallthru
        _
      %p211 = scmp.lt.s32.totalorder %s16, 2
      // Predicated region
      $region33: #{tpu_custom_call.1} parent=5 // pred_check
        %p212 = pneg %p211
      $region34: #{tpu_custom_call.1} parent=5 // pred_check_branch
        %214 = sbr.rel (%p212) target = $region36
      $region35: #{tpu_custom_call.1} parent=5 // pred_region
        // Predicated region
        $region37: #{tpu_custom_call.1} parent=35 // pred_check
          %p215 = pneg %p57
        $region38: #{tpu_custom_call.1} parent=35 // pred_check_branch
          %217 = sbr.rel (%p215) target = $region40
        $region39: #{tpu_custom_call.1} parent=35 // pred_region
          %s218 = sand.u32 %s47, 1
          %s219 = sand.u32 %s47, 1
          %s220 = smul.addr %s219, 16
          %s221 = scalar_lea.vmem [#allocation5], %s220
          %s222 = smul.addr %s16, 8
          %s223 = scalar_lea.vmem %s1, %s222
          // Predicated region
          $region41: #{tpu_custom_call.1} parent=39 // pred_check
            _
          $region42: #{tpu_custom_call.1} parent=39 // pred_check_branch
            %225 = sbr.rel (0) target = $region44
          $region43: #{tpu_custom_call.1} parent=39 // pred_region
            // Predicated region
            $region45: #{tpu_custom_call.1} parent=43 // pred_check
              _
            $region46: #{tpu_custom_call.1} parent=43 // pred_check_branch
              %227 = sbr.rel (0) target = $region48
            $region47: #{tpu_custom_call.1} parent=43 // pred_region
              // Predicated region
              $region60: #{tpu_custom_call.1} parent=47 // pred_check
                _
              $region61: #{tpu_custom_call.1} parent=47 // pred_check_branch
                %245 = sbr.rel (0) target = $region63
              $region62: #{tpu_custom_call.1} parent=47 // pred_region
                loop: start=0, step=1, limit=1
                $region64: #{tpu_custom_call.1} parent=62 // loop_pre_header
                  _
                $region65: #{tpu_custom_call.1} parent=62 // loop_header
                  %s247 = sphi 0, %s251
                  %p248 = scmp.ge.s32.totalorder %s247, 1
                  %s252 = sphi %s223, %s223
                  %s253 = sphi %s221, %s221
                $region66: #{tpu_custom_call.1} parent=62 // loop_header_branch
                  %250 = sbr.rel (%p248) target = $region70
                $region67: #{tpu_custom_call.1} parent=62 // loop_body
                  %v254 = vld [vmem:[%s252] sm:$0xff]
                  %255 = vst [vmem:[%s253] sm:$0xff] %v254
                  %v256 = vld [vmem:[%s252 + $0x10] sm:$0xff]
                  %257 = vst [vmem:[%s253 + $0x8] sm:$0xff] %v256
                $region68: #{tpu_custom_call.1} parent=62 // loop_footer
                  %s251 = sadd.s32 1, %s247
                $region69: #{tpu_custom_call.1} parent=62 // loop_footer_branch
                  %246 = sbr.rel target = $region65
                $region70: #{tpu_custom_call.1} parent=62 // loop_exit
                  _
              $region63: #{tpu_custom_call.1} parent=47 // pred_fallthru
                _
              // Predicated region
              $region71: #{tpu_custom_call.1} parent=47 // pred_check
                _
              $region72: #{tpu_custom_call.1} parent=47 // pred_check_branch
                %259 = sbr.rel target = $region74
              $region73: #{tpu_custom_call.1} parent=47 // pred_region
                _
              $region74: #{tpu_custom_call.1} parent=47 // pred_fallthru
                _
            $region48: #{tpu_custom_call.1} parent=43 // pred_fallthru
              _
            // Predicated region
            $region49: #{tpu_custom_call.1} parent=43 // pred_check
              _
            $region50: #{tpu_custom_call.1} parent=43 // pred_check_branch
              %229 = sbr.rel target = $region52
            $region51: #{tpu_custom_call.1} parent=43 // pred_region
              %s231 = ssub.s32 256, 1
              loop: start=0, step=1, limit=1
              $region53: #{tpu_custom_call.1} parent=51 // loop_pre_header
                _
              $region54: #{tpu_custom_call.1} parent=51 // loop_header
                %s233 = sphi 0, %s237
                %p234 = scmp.ge.s32.totalorder %s233, 1
                %s238 = sphi %s223, %s223
                %s239 = sphi %s221, %s221
              $region55: #{tpu_custom_call.1} parent=51 // loop_header_branch
                %236 = sbr.rel (%p234) target = $region59
              $region56: #{tpu_custom_call.1} parent=51 // loop_body
                %v240 = vld [vmem:[%s238] sm:%s231]
                %241 = vst [vmem:[%s239] sm:%s231] %v240
                %v242 = vld [vmem:[%s238 + $0x10] sm:%s231]
                %243 = vst [vmem:[%s239 + $0x8] sm:%s231] %v242
              $region57: #{tpu_custom_call.1} parent=51 // loop_footer
                %s237 = sadd.s32 1, %s233
              $region58: #{tpu_custom_call.1} parent=51 // loop_footer_branch
                %232 = sbr.rel target = $region54
              $region59: #{tpu_custom_call.1} parent=51 // loop_exit
                _
            $region52: #{tpu_custom_call.1} parent=43 // pred_fallthru
              _
          $region44: #{tpu_custom_call.1} parent=39 // pred_fallthru
            _
          %260 = vnop
        $region40: #{tpu_custom_call.1} parent=35 // pred_fallthru
          _
      $region36: #{tpu_custom_call.1} parent=5 // pred_fallthru
        _
      %p261 = scmp.le.s32.totalorder 1, %s16
      %p262 = scmp.lt.s32.totalorder %s16, 3
      %p263 = pnand %p261, %p262
      %p264 = pneg %p263
      // Predicated region
      $region75: #{tpu_custom_call.1} parent=5 // pred_check
        _
      $region76: #{tpu_custom_call.1} parent=5 // pred_check_branch
        %266 = sbr.rel (%p263) target = $region78
      $region77: #{tpu_custom_call.1} parent=5 // pred_region
        %s267 = ssub.s32 %s16, 1
        // Predicated region
        $region79: #{tpu_custom_call.1} parent=77 // pred_check
          %p268 = pneg %p37
        $region80: #{tpu_custom_call.1} parent=77 // pred_check_branch
          %270 = sbr.rel (%p268) target = $region82
        $region81: #{tpu_custom_call.1} parent=77 // pred_region
          %271 = dma.done [#allocation4], 16
        $region82: #{tpu_custom_call.1} parent=77 // pred_fallthru
          _
        %s272 = sand.u32 %s50, 1
        %s273 = sand.u32 %s50, 1
        %s274 = smul.addr %s273, 16
        %s275 = scalar_lea.vmem [#allocation5], %s274
        // Predicated region
        $region83: #{tpu_custom_call.1} parent=77 // pred_check
          %p276 = pneg %p63
        $region84: #{tpu_custom_call.1} parent=77 // pred_check_branch
          %278 = sbr.rel (%p276) target = $region86
        $region85: #{tpu_custom_call.1} parent=77 // pred_region
          _
        $region86: #{tpu_custom_call.1} parent=77 // pred_fallthru
          _
        %279 = sfence
        %p280 = pneg %p37
        %p281 = pneg %p34
        %s282 = sand.u32 %s50, 1
        %s283 = sand.u32 %s50, 1
        %s284 = smul.addr %s283, 16
        %s285 = scalar_lea.vmem [#allocation5], %s284
        %p286 = pneg %p63
        %p287 = pneg %p60
        %p288 = pneg %p84
        %p289 = pneg %p81
        %p290 = pneg %p105
        %p291 = pneg %p102
        %p292 = pneg %p126
        %p293 = pneg %p123
        %p294 = pneg %p147
        %p295 = pneg %p144
        %p296 = pneg %p173
        %p297 = pneg %p170
        %s298 = sand.u32 %s160, 1
        %s299 = scalar_lea.sflag [#allocation3], %s298
        %s300 = sand.u32 %s160, 1
        %s301 = smul.addr %s300, 8
        %s302 = scalar_lea.vmem [#allocation6], %s301
        %s304 = sld [smem:[#allocation2]]
        %s305 = sld [smem:[#allocation2 + $0x1]]
        %v306 = vld [vmem:[%s275] sm:$0xff]
        %v307 = vld [vmem:[%s275 + $0x8] sm:$0xff]
        %v308 = vld [vmem:[%s2] sm:$0xf]
        %v309 = vld [vmem:[%s2 + $0x4] sm:$0xf]
        %v310 = vld [vmem:[%s2 + $0x8] sm:$0xf]
        %v311 = vld [vmem:[%s2 + $0xc] sm:$0xf]
        %v312 = vld [vmem:[%s3] sm:$0xf]
        %v313 = vld [vmem:[%s3 + $0x4] sm:$0xf]
        %v314 = vld [vmem:[%s3 + $0x8] sm:$0xf]
        %v315 = vld [vmem:[%s3 + $0xc] sm:$0xf]
        %v316 = vld [vmem:[%s3 + $0x10] sm:$0xf]
        %v317 = vld [vmem:[%s3 + $0x14] sm:$0xf]
        %v318 = vld [vmem:[%s3 + $0x18] sm:$0xf]
        %v319 = vld [vmem:[%s3 + $0x1c] sm:$0xf]
        %v320 = vld [vmem:[%s3 + $0x20] sm:$0xf]
        %v321 = vld [vmem:[%s3 + $0x24] sm:$0xf]
        %v322 = vld [vmem:[%s3 + $0x28] sm:$0xf]
        %v323 = vld [vmem:[%s3 + $0x2c] sm:$0xf]
        %v324 = vld [vmem:[%s3 + $0x30] sm:$0xf]
        %v325 = vld [vmem:[%s3 + $0x34] sm:$0xf]
        %v326 = vld [vmem:[%s3 + $0x38] sm:$0xf]
        %v327 = vld [vmem:[%s3 + $0x3c] sm:$0xf]
        %v328 = vld [vmem:[%s3 + $0x40] sm:$0xf]
        %v329 = vld [vmem:[%s3 + $0x44] sm:$0xf]
        %v330 = vld [vmem:[%s3 + $0x48] sm:$0xf]
        %v331 = vld [vmem:[%s3 + $0x4c] sm:$0xf]
        %v332 = vld [vmem:[%s4] sm:$0xff]
        %v333 = vld [vmem:[%s5] sm:$0xff]
        %v334 = vld [vmem:[%s5 + $0x8] sm:$0xff]
        %v335 = vld [vmem:[%s5 + $0x10] sm:$0xff]
        %v336 = vld [vmem:[%s5 + $0x18] sm:$0xff]
        %v337 = vld [vmem:[%s5 + $0x20] sm:$0xff]
        %v338 = vld [vmem:[%s5 + $0x28] sm:$0xff]
        %v339 = vld [vmem:[%s5 + $0x30] sm:$0xff]
        %v340 = vld [vmem:[%s5 + $0x38] sm:$0xff]
        %v341 = vld [vmem:[%s5 + $0x40] sm:$0xff]
        %v342 = vld [vmem:[%s5 + $0x48] sm:$0xff]
        %v343 = vld [vmem:[%s5 + $0x50] sm:$0xff]
        %v344 = vld [vmem:[%s5 + $0x58] sm:$0xff]
        %v345 = vld [vmem:[%s5 + $0x60] sm:$0xff]
        %v346 = vld [vmem:[%s5 + $0x68] sm:$0xff]
        %v347 = vld [vmem:[%s5 + $0x70] sm:$0xff]
        %v348 = vld [vmem:[%s5 + $0x78] sm:$0xff]
        %v349 = vld [vmem:[%s5 + $0x80] sm:$0xff]
        %v350 = vld [vmem:[%s5 + $0x88] sm:$0xff]
        %352 = vset.pattern.permute.xlu0 9
        %353 = vperm.xlu0 %352, %v333
        %v354 = vpop.permute.xlu0 %353
        %357 = vset.pattern.permute.xlu0 9
        %358 = vperm.xlu0 %357, %v334
        %v359 = vpop.permute.xlu0 %358
        %362 = vset.pattern.permute.xlu0 9
        %363 = vperm.xlu0 %362, %v335
        %v364 = vpop.permute.xlu0 %363
        %367 = vset.pattern.permute.xlu0 9
        %368 = vperm.xlu0 %367, %v336
        %v369 = vpop.permute.xlu0 %368
        %372 = vset.pattern.permute.xlu0 9
        %373 = vperm.xlu0 %372, %v337
        %v374 = vpop.permute.xlu0 %373
        %377 = vset.pattern.permute.xlu0 9
        %378 = vperm.xlu0 %377, %v338
        %v379 = vpop.permute.xlu0 %378
        %382 = vset.pattern.permute.xlu0 9
        %383 = vperm.xlu0 %382, %v339
        %v384 = vpop.permute.xlu0 %383
        %387 = vset.pattern.permute.xlu0 9
        %388 = vperm.xlu0 %387, %v340
        %v389 = vpop.permute.xlu0 %388
        %392 = vset.pattern.permute.xlu0 9
        %393 = vperm.xlu0 %392, %v341
        %v394 = vpop.permute.xlu0 %393
        %397 = vset.pattern.permute.xlu0 9
        %398 = vperm.xlu0 %397, %v342
        %v399 = vpop.permute.xlu0 %398
        %402 = vset.pattern.permute.xlu0 9
        %403 = vperm.xlu0 %402, %v343
        %v404 = vpop.permute.xlu0 %403
        %407 = vset.pattern.permute.xlu0 9
        %408 = vperm.xlu0 %407, %v344
        %v409 = vpop.permute.xlu0 %408
        %412 = vset.pattern.permute.xlu0 9
        %413 = vperm.xlu0 %412, %v345
        %v414 = vpop.permute.xlu0 %413
        %417 = vset.pattern.permute.xlu0 9
        %418 = vperm.xlu0 %417, %v346
        %v419 = vpop.permute.xlu0 %418
        %422 = vset.pattern.permute.xlu0 9
        %423 = vperm.xlu0 %422, %v347
        %v424 = vpop.permute.xlu0 %423
        %427 = vset.pattern.permute.xlu0 9
        %428 = vperm.xlu0 %427, %v348
        %v429 = vpop.permute.xlu0 %428
        %432 = vset.pattern.permute.xlu0 9
        %433 = vperm.xlu0 %432, %v349
        %v434 = vpop.permute.xlu0 %433
        %437 = vset.pattern.permute.xlu0 9
        %438 = vperm.xlu0 %437, %v350
        %v439 = vpop.permute.xlu0 %438
        %vm441 = vcmask 64512
        %v442 = vsel %vm441, %v333, 0
        %v444 = vsel %vm441, %v334, 0
        %v446 = vsel %vm441, %v335, 0
        %v448 = vsel %vm441, %v336, 0
        %v450 = vsel %vm441, %v337, 0
        %v452 = vsel %vm441, %v338, 0
        %v454 = vsel %vm441, %v339, 0
        %v456 = vsel %vm441, %v340, 0
        %v458 = vsel %vm441, %v341, 0
        %v460 = vsel %vm441, %v342, 0
        %v462 = vsel %vm441, %v343, 0
        %v464 = vsel %vm441, %v344, 0
        %v466 = vsel %vm441, %v345, 0
        %v468 = vsel %vm441, %v346, 0
        %v470 = vsel %vm441, %v347, 0
        %v472 = vsel %vm441, %v348, 0
        %v474 = vsel %vm441, %v349, 0
        %v476 = vsel %vm441, %v350, 0
        %478 = vmatprep.subr.mxu0 0.0
        %479 = vmatpush1.msra.mxu0 0.0
        %480 = vmatprep.subr.mxu0 0.0
        %481 = vmatpush1.msra.mxu0 0.0
        %482 = vmatprep.subr.mxu0 0.0
        %483 = vmatpush1.msra.mxu0 0.0
        %484 = vmatprep.subr.mxu0 0.0
        %485 = vmatpush1.msra.mxu0 0.0
        %486 = vmatprep.subr.mxu0 0.0
        %487 = vmatpush1.msra.mxu0 0.0
        %488 = vmatprep.subr.mxu0 0.0
        %489 = vmatpush1.msra.mxu0 0.0
        %490 = vmatprep.subr.mxu0 0.0
        %491 = vmatpush1.msra.mxu0 0.0
        %492 = vmatprep.subr.mxu0 0.0
        %493 = vmatpush1.msra.mxu0 0.0
        %494 = vmatprep.subr.mxu0 0.0
        %495 = vmatpush1.msra.mxu0 0.0
        %496 = vmatprep.subr.mxu0 0.0
        %497 = vmatpush1.msra.mxu0 0.0
        %498 = vmatprep.subr.mxu0 0.0
        %499 = vmatpush1.msra.mxu0 0.0
        %500 = vmatprep.subr.mxu0 0.0
        %501 = vmatpush1.msra.mxu0 0.0
        %502 = vmatprep.subr.mxu0 0.0
        %503 = vmatpush1.msra.mxu0 0.0
        %504 = vmatprep.subr.mxu0 0.0
        %505 = vmatpush1.msra.mxu0 0.0
        %506 = vmatprep.subr.mxu0 0.0
        %507 = vmatpush1.msra.mxu0 0.0
        %508 = vmatprep.subr.mxu0 0.0
        %509 = vmatpush1.msra.mxu0 %v307
        %510 = vmatprep.subr.mxu0 0.0
        %511 = vmatpush2.msra.mxu0 0.0
        %512 = vmatprep.subr.mxu0 0.0
        %513 = vmatpush2.msra.mxu0 0.0
        %514 = vmatprep.subr.mxu0 0.0
        %515 = vmatpush2.msra.mxu0 0.0
        %516 = vmatprep.subr.mxu0 0.0
        %517 = vmatpush2.msra.mxu0 0.0
        %518 = vmatprep.subr.mxu0 0.0
        %519 = vmatpush2.msra.mxu0 0.0
        %520 = vmatprep.subr.mxu0 0.0
        %521 = vmatpush2.msra.mxu0 0.0
        %522 = vmatprep.subr.mxu0 0.0
        %523 = vmatpush2.msra.mxu0 0.0
        %524 = vmatprep.subr.mxu0 0.0
        %525 = vmatpush2.msra.mxu0 0.0
        %526 = vmatprep.subr.mxu0 0.0
        %527 = vmatpush2.msra.mxu0 0.0
        %528 = vmatprep.subr.mxu0 0.0
        %529 = vmatpush2.msra.mxu0 0.0
        %530 = vmatprep.subr.mxu0 0.0
        %531 = vmatpush2.msra.mxu0 0.0
        %532 = vmatprep.subr.mxu0 0.0
        %533 = vmatpush2.msra.mxu0 0.0
        %534 = vmatprep.subr.mxu0 0.0
        %535 = vmatpush2.msra.mxu0 0.0
        %536 = vmatprep.subr.mxu0 0.0
        %537 = vmatpush2.msra.mxu0 0.0
        %538 = vmatprep.subr.mxu0 0.0
        %539 = vmatpush2.msra.mxu0 0.0
        %540 = vmatprep.subr.mxu0 0.0
        %541 = vmatpush2.msra.mxu0 0.0
        %542 = vmatprep.mubr.f32.mxu0 0.0
        %543 = vmatmul.mubr.f32.gmra.mxu0 %v442
        %v544 = vpop.f32.mrf.mxu0
        %v545 = vadd.f32 %v354, %v544
        %v546 = vpop.f32.mrf.mxu0
        %547 = vmatprep.mubr.f32.mxu0 0.0
        %548 = vmatmul.mubr.f32.gmra.mxu0 %v444
        %v549 = vpop.f32.mrf.mxu0
        %v550 = vadd.f32 %v359, %v549
        %v551 = vpop.f32.mrf.mxu0
        %552 = vmatprep.mubr.f32.mxu0 0.0
        %553 = vmatmul.mubr.f32.gmra.mxu0 %v446
        %v554 = vpop.f32.mrf.mxu0
        %v555 = vadd.f32 %v364, %v554
        %v556 = vpop.f32.mrf.mxu0
        %557 = vmatprep.mubr.f32.mxu0 0.0
        %558 = vmatmul.mubr.f32.gmra.mxu0 %v448
        %v559 = vpop.f32.mrf.mxu0
        %v560 = vadd.f32 %v369, %v559
        %v561 = vpop.f32.mrf.mxu0
        %562 = vmatprep.mubr.f32.mxu0 0.0
        %563 = vmatmul.mubr.f32.gmra.mxu0 %v450
        %v564 = vpop.f32.mrf.mxu0
        %v565 = vadd.f32 %v374, %v564
        %v566 = vpop.f32.mrf.mxu0
        %567 = vmatprep.mubr.f32.mxu0 0.0
        %568 = vmatmul.mubr.f32.gmra.mxu0 %v452
        %v569 = vpop.f32.mrf.mxu0
        %v570 = vadd.f32 %v379, %v569
        %v571 = vpop.f32.mrf.mxu0
        %572 = vmatprep.mubr.f32.mxu0 0.0
        %573 = vmatmul.mubr.f32.gmra.mxu0 %v454
        %v574 = vpop.f32.mrf.mxu0
        %v575 = vadd.f32 %v384, %v574
        %v576 = vpop.f32.mrf.mxu0
        %577 = vmatprep.mubr.f32.mxu0 0.0
        %578 = vmatmul.mubr.f32.gmra.mxu0 %v456
        %v579 = vpop.f32.mrf.mxu0
        %v580 = vadd.f32 %v389, %v579
        %v581 = vpop.f32.mrf.mxu0
        %582 = vmatprep.mubr.f32.mxu0 0.0
        %583 = vmatmul.mubr.f32.gmra.mxu0 %v458
        %v584 = vpop.f32.mrf.mxu0
        %v585 = vadd.f32 %v394, %v584
        %v586 = vpop.f32.mrf.mxu0
        %587 = vmatprep.mubr.f32.mxu0 0.0
        %588 = vmatmul.mubr.f32.gmra.mxu0 %v460
        %v589 = vpop.f32.mrf.mxu0
        %v590 = vadd.f32 %v399, %v589
        %v591 = vpop.f32.mrf.mxu0
        %592 = vmatprep.mubr.f32.mxu0 0.0
        %593 = vmatmul.mubr.f32.gmra.mxu0 %v462
        %v594 = vpop.f32.mrf.mxu0
        %v595 = vadd.f32 %v404, %v594
        %v596 = vpop.f32.mrf.mxu0
        %597 = vmatprep.mubr.f32.mxu0 0.0
        %598 = vmatmul.mubr.f32.gmra.mxu0 %v464
        %v599 = vpop.f32.mrf.mxu0
        %v600 = vadd.f32 %v409, %v599
        %v601 = vpop.f32.mrf.mxu0
        %602 = vmatprep.mubr.f32.mxu0 0.0
        %603 = vmatmul.mubr.f32.gmra.mxu0 %v466
        %v604 = vpop.f32.mrf.mxu0
        %v605 = vadd.f32 %v414, %v604
        %v606 = vpop.f32.mrf.mxu0
        %607 = vmatprep.mubr.f32.mxu0 0.0
        %608 = vmatmul.mubr.f32.gmra.mxu0 %v468
        %v609 = vpop.f32.mrf.mxu0
        %v610 = vadd.f32 %v419, %v609
        %v611 = vpop.f32.mrf.mxu0
        %612 = vmatprep.mubr.f32.mxu0 0.0
        %613 = vmatmul.mubr.f32.gmra.mxu0 %v470
        %v614 = vpop.f32.mrf.mxu0
        %v615 = vadd.f32 %v424, %v614
        %v616 = vpop.f32.mrf.mxu0
        %617 = vmatprep.mubr.f32.mxu0 0.0
        %618 = vmatmul.mubr.f32.gmra.mxu0 %v472
        %v619 = vpop.f32.mrf.mxu0
        %v620 = vadd.f32 %v429, %v619
        %v621 = vpop.f32.mrf.mxu0
        %622 = vmatprep.mubr.f32.mxu0 0.0
        %623 = vmatmul.mubr.f32.gmra.mxu0 %v474
        %v624 = vpop.f32.mrf.mxu0
        %v625 = vadd.f32 %v434, %v624
        %v626 = vpop.f32.mrf.mxu0
        %627 = vmatprep.mubr.f32.mxu0 0.0
        %628 = vmatmul.mubr.f32.gmra.mxu0 %v476
        %v629 = vpop.f32.mrf.mxu0
        %v630 = vadd.f32 %v439, %v629
        %v631 = vpop.f32.mrf.mxu0
        %632 = vdwg.mxu0
        %v633 = vstv %s304
        %v634 = vmul.f32 %v633, %v333
        %v635 = vmul.f32 %v633, %v334
        %v636 = vmul.f32 %v633, %v335
        %v637 = vmul.f32 %v633, %v336
        %v638 = vmul.f32 %v633, %v337
        %v639 = vmul.f32 %v633, %v338
        %v640 = vmul.f32 %v633, %v339
        %v641 = vmul.f32 %v633, %v340
        %v642 = vmul.f32 %v633, %v341
        %v643 = vmul.f32 %v633, %v342
        %v644 = vmul.f32 %v633, %v343
        %v645 = vmul.f32 %v633, %v344
        %v646 = vmul.f32 %v633, %v345
        %v647 = vmul.f32 %v633, %v346
        %v648 = vmul.f32 %v633, %v347
        %v649 = vmul.f32 %v633, %v348
        %v650 = vmul.f32 %v633, %v349
        %v651 = vmul.f32 %v633, %v350
        %653 = vset.pattern.permute.xlu0 8
        %654 = vperm.xlu0 %653, %v634
        %v655 = vpop.permute.xlu0 %654
        %658 = vset.pattern.permute.xlu0 8
        %659 = vperm.xlu0 %658, %v635
        %v660 = vpop.permute.xlu0 %659
        %663 = vset.pattern.permute.xlu0 8
        %664 = vperm.xlu0 %663, %v636
        %v665 = vpop.permute.xlu0 %664
        %668 = vset.pattern.permute.xlu0 8
        %669 = vperm.xlu0 %668, %v637
        %v670 = vpop.permute.xlu0 %669
        %673 = vset.pattern.permute.xlu0 8
        %674 = vperm.xlu0 %673, %v638
        %v675 = vpop.permute.xlu0 %674
        %678 = vset.pattern.permute.xlu0 8
        %679 = vperm.xlu0 %678, %v639
        %v680 = vpop.permute.xlu0 %679
        %683 = vset.pattern.permute.xlu0 8
        %684 = vperm.xlu0 %683, %v640
        %v685 = vpop.permute.xlu0 %684
        %688 = vset.pattern.permute.xlu0 8
        %689 = vperm.xlu0 %688, %v641
        %v690 = vpop.permute.xlu0 %689
        %693 = vset.pattern.permute.xlu0 8
        %694 = vperm.xlu0 %693, %v642
        %v695 = vpop.permute.xlu0 %694
        %698 = vset.pattern.permute.xlu0 8
        %699 = vperm.xlu0 %698, %v643
        %v700 = vpop.permute.xlu0 %699
        %703 = vset.pattern.permute.xlu0 8
        %704 = vperm.xlu0 %703, %v644
        %v705 = vpop.permute.xlu0 %704
        %708 = vset.pattern.permute.xlu0 8
        %709 = vperm.xlu0 %708, %v645
        %v710 = vpop.permute.xlu0 %709
        %713 = vset.pattern.permute.xlu0 8
        %714 = vperm.xlu0 %713, %v646
        %v715 = vpop.permute.xlu0 %714
        %718 = vset.pattern.permute.xlu0 8
        %719 = vperm.xlu0 %718, %v647
        %v720 = vpop.permute.xlu0 %719
        %723 = vset.pattern.permute.xlu0 8
        %724 = vperm.xlu0 %723, %v648
        %v725 = vpop.permute.xlu0 %724
        %728 = vset.pattern.permute.xlu0 8
        %729 = vperm.xlu0 %728, %v649
        %v730 = vpop.permute.xlu0 %729
        %733 = vset.pattern.permute.xlu0 8
        %734 = vperm.xlu0 %733, %v650
        %v735 = vpop.permute.xlu0 %734
        %738 = vset.pattern.permute.xlu0 8
        %739 = vperm.xlu0 %738, %v651
        %v740 = vpop.permute.xlu0 %739
        %v742 = vadd.f32 %v545, %v655
        %v743 = vadd.f32 %v550, %v660
        %v744 = vadd.f32 %v555, %v665
        %v745 = vadd.f32 %v560, %v670
        %v746 = vadd.f32 %v565, %v675
        %v747 = vadd.f32 %v570, %v680
        %v748 = vadd.f32 %v575, %v685
        %v749 = vadd.f32 %v580, %v690
        %v750 = vadd.f32 %v585, %v695
        %v751 = vadd.f32 %v590, %v700
        %v752 = vadd.f32 %v595, %v705
        %v753 = vadd.f32 %v600, %v710
        %v754 = vadd.f32 %v605, %v715
        %v755 = vadd.f32 %v610, %v720
        %v756 = vadd.f32 %v615, %v725
        %v757 = vadd.f32 %v620, %v730
        %v758 = vadd.f32 %v625, %v735
        %v759 = vadd.f32 %v630, %v740
        %v760 = vxor.u32 %v742, 2147483648
        %v761 = vxor.u32 %v743, 2147483648
        %v762 = vxor.u32 %v744, 2147483648
        %v763 = vxor.u32 %v745, 2147483648
        %v764 = vxor.u32 %v746, 2147483648
        %v765 = vxor.u32 %v747, 2147483648
        %v766 = vxor.u32 %v748, 2147483648
        %v767 = vxor.u32 %v749, 2147483648
        %v768 = vxor.u32 %v750, 2147483648
        %v769 = vmul.f32 %v760, 1.442695
        %v770 = vpow.pop %v769
        %v771 = vmul.f32 %v761, 1.442695
        %v772 = vpow.pop %v771
        %v773 = vmul.f32 %v762, 1.442695
        %v774 = vpow.pop %v773
        %v775 = vmul.f32 %v763, 1.442695
        %v776 = vpow.pop %v775
        %v777 = vmul.f32 %v764, 1.442695
        %v778 = vpow.pop %v777
        %v779 = vmul.f32 %v765, 1.442695
        %v780 = vpow.pop %v779
        %v781 = vmul.f32 %v766, 1.442695
        %v782 = vpow.pop %v781
        %v783 = vmul.f32 %v767, 1.442695
        %v784 = vpow.pop %v783
        %v785 = vmul.f32 %v768, 1.442695
        %v786 = vpow.pop %v785
        %v787 = vadd.f32 %v770, 1.0
        %v788 = vadd.f32 %v772, 1.0
        %v789 = vadd.f32 %v774, 1.0
        %v790 = vadd.f32 %v776, 1.0
        %v791 = vadd.f32 %v778, 1.0
        %v792 = vadd.f32 %v780, 1.0
        %v793 = vadd.f32 %v782, 1.0
        %v794 = vadd.f32 %v784, 1.0
        %v795 = vadd.f32 %v786, 1.0
        %v796 = vrcp.pop %v787
        %v797 = vmul.f32 1.0, %v796
        %v798 = vrcp.pop %v788
        %v799 = vmul.f32 1.0, %v798
        %v800 = vrcp.pop %v789
        %v801 = vmul.f32 1.0, %v800
        %v802 = vrcp.pop %v790
        %v803 = vmul.f32 1.0, %v802
        %v804 = vrcp.pop %v791
        %v805 = vmul.f32 1.0, %v804
        %v806 = vrcp.pop %v792
        %v807 = vmul.f32 1.0, %v806
        %v808 = vrcp.pop %v793
        %v809 = vmul.f32 1.0, %v808
        %v810 = vrcp.pop %v794
        %v811 = vmul.f32 1.0, %v810
        %v812 = vrcp.pop %v795
        %v813 = vmul.f32 1.0, %v812
        %814 = vset.pattern.permute.xlu0 10
        %815 = vperm.xlu0 %814, %v342
        %v816 = vpop.permute.xlu0 %815
        %818 = vset.pattern.permute.xlu0 10
        %819 = vperm.xlu0 %818, %v343
        %v820 = vpop.permute.xlu0 %819
        %822 = vset.pattern.permute.xlu0 10
        %823 = vperm.xlu0 %822, %v344
        %v824 = vpop.permute.xlu0 %823
        %826 = vset.pattern.permute.xlu0 10
        %827 = vperm.xlu0 %826, %v345
        %v828 = vpop.permute.xlu0 %827
        %830 = vset.pattern.permute.xlu0 10
        %831 = vperm.xlu0 %830, %v346
        %v832 = vpop.permute.xlu0 %831
        %834 = vset.pattern.permute.xlu0 10
        %835 = vperm.xlu0 %834, %v347
        %v836 = vpop.permute.xlu0 %835
        %838 = vset.pattern.permute.xlu0 10
        %839 = vperm.xlu0 %838, %v348
        %v840 = vpop.permute.xlu0 %839
        %842 = vset.pattern.permute.xlu0 10
        %843 = vperm.xlu0 %842, %v349
        %v844 = vpop.permute.xlu0 %843
        %846 = vset.pattern.permute.xlu0 10
        %847 = vperm.xlu0 %846, %v350
        %v848 = vpop.permute.xlu0 %847
        %v850 = vmul.f32 %v816, %v797
        %v851 = vmul.f32 %v820, %v799
        %v852 = vmul.f32 %v824, %v801
        %v853 = vmul.f32 %v828, %v803
        %v854 = vmul.f32 %v832, %v805
        %v855 = vmul.f32 %v836, %v807
        %v856 = vmul.f32 %v840, %v809
        %v857 = vmul.f32 %v844, %v811
        %v858 = vmul.f32 %v848, %v813
        %v859 = vadd.f32 %v751, %v850
        %v860 = vadd.f32 %v752, %v851
        %v861 = vadd.f32 %v753, %v852
        %v862 = vadd.f32 %v754, %v853
        %v863 = vadd.f32 %v755, %v854
        %v864 = vadd.f32 %v756, %v855
        %v865 = vadd.f32 %v757, %v856
        %v866 = vadd.f32 %v758, %v857
        %v867 = vadd.f32 %v759, %v858
        loop: start=0, step=1, limit=16
        $region87: #{tpu_custom_call.1} parent=77 // loop_pre_header
          _
        $region88: #{tpu_custom_call.1} parent=77 // loop_header
          %s869 = sphi 0, %s873
          %p870 = scmp.ge.s32.totalorder %s869, 16
          %v874 = vphi %v306, %v2617
          %v875 = vphi %v306, %v2623
          %v876 = vphi %v797, %v1263
          %v877 = vphi %v799, %v1265
          %v878 = vphi %v801, %v1267
          %v879 = vphi %v803, %v1269
          %v880 = vphi %v805, %v1271
          %v881 = vphi %v807, %v1273
          %v882 = vphi %v809, %v1275
          %v883 = vphi %v811, %v1277
          %v884 = vphi %v813, %v1279
          %v885 = vphi %v859, %v1289
          %v886 = vphi %v860, %v1290
          %v887 = vphi %v861, %v1291
          %v888 = vphi %v862, %v1292
          %v889 = vphi %v863, %v1293
          %v890 = vphi %v864, %v1294
          %v891 = vphi %v865, %v1295
          %v892 = vphi %v866, %v1296
          %v893 = vphi %v867, %v1297
        $region89: #{tpu_custom_call.1} parent=77 // loop_header_branch
          %872 = sbr.rel (%p870) target = $region93
        $region90: #{tpu_custom_call.1} parent=77 // loop_body
          %s894 = scvt.s32.f32 %s869
          %s895 = smul.f32 %s305, %s894
          %s896 = sadd.f32 %s304, %s895
          %s897 = smul.f32 %s305, 0.5
          %s898 = sadd.f32 %s896, %s897
          %v899 = vstv %s898
          %v900 = vmul.f32 %v899, %v333
          %v901 = vmul.f32 %v899, %v334
          %v902 = vmul.f32 %v899, %v335
          %v903 = vmul.f32 %v899, %v336
          %v904 = vmul.f32 %v899, %v337
          %v905 = vmul.f32 %v899, %v338
          %v906 = vmul.f32 %v899, %v339
          %v907 = vmul.f32 %v899, %v340
          %v908 = vmul.f32 %v899, %v341
          %v909 = vmul.f32 %v899, %v342
          %v910 = vmul.f32 %v899, %v343
          %v911 = vmul.f32 %v899, %v344
          %v912 = vmul.f32 %v899, %v345
          %v913 = vmul.f32 %v899, %v346
          %v914 = vmul.f32 %v899, %v347
          %v915 = vmul.f32 %v899, %v348
          %v916 = vmul.f32 %v899, %v349
          %v917 = vmul.f32 %v899, %v350
          %919 = vset.pattern.permute.xlu0 8
          %920 = vperm.xlu0 %919, %v900
          %v921 = vpop.permute.xlu0 %920
          %924 = vset.pattern.permute.xlu0 8
          %925 = vperm.xlu0 %924, %v901
          %v926 = vpop.permute.xlu0 %925
          %929 = vset.pattern.permute.xlu0 8
          %930 = vperm.xlu0 %929, %v902
          %v931 = vpop.permute.xlu0 %930
          %934 = vset.pattern.permute.xlu0 8
          %935 = vperm.xlu0 %934, %v903
          %v936 = vpop.permute.xlu0 %935
          %939 = vset.pattern.permute.xlu0 8
          %940 = vperm.xlu0 %939, %v904
          %v941 = vpop.permute.xlu0 %940
          %944 = vset.pattern.permute.xlu0 8
          %945 = vperm.xlu0 %944, %v905
          %v946 = vpop.permute.xlu0 %945
          %949 = vset.pattern.permute.xlu0 8
          %950 = vperm.xlu0 %949, %v906
          %v951 = vpop.permute.xlu0 %950
          %954 = vset.pattern.permute.xlu0 8
          %955 = vperm.xlu0 %954, %v907
          %v956 = vpop.permute.xlu0 %955
          %959 = vset.pattern.permute.xlu0 8
          %960 = vperm.xlu0 %959, %v908
          %v961 = vpop.permute.xlu0 %960
          %964 = vset.pattern.permute.xlu0 8
          %965 = vperm.xlu0 %964, %v909
          %v966 = vpop.permute.xlu0 %965
          %969 = vset.pattern.permute.xlu0 8
          %970 = vperm.xlu0 %969, %v910
          %v971 = vpop.permute.xlu0 %970
          %974 = vset.pattern.permute.xlu0 8
          %975 = vperm.xlu0 %974, %v911
          %v976 = vpop.permute.xlu0 %975
          %979 = vset.pattern.permute.xlu0 8
          %980 = vperm.xlu0 %979, %v912
          %v981 = vpop.permute.xlu0 %980
          %984 = vset.pattern.permute.xlu0 8
          %985 = vperm.xlu0 %984, %v913
          %v986 = vpop.permute.xlu0 %985
          %989 = vset.pattern.permute.xlu0 8
          %990 = vperm.xlu0 %989, %v914
          %v991 = vpop.permute.xlu0 %990
          %994 = vset.pattern.permute.xlu0 8
          %995 = vperm.xlu0 %994, %v915
          %v996 = vpop.permute.xlu0 %995
          %999 = vset.pattern.permute.xlu0 8
          %1000 = vperm.xlu0 %999, %v916
          %v1001 = vpop.permute.xlu0 %1000
          %1004 = vset.pattern.permute.xlu0 8
          %1005 = vperm.xlu0 %1004, %v917
          %v1006 = vpop.permute.xlu0 %1005
          %v1008 = vadd.f32 %v545, %v921
          %v1009 = vadd.f32 %v550, %v926
          %v1010 = vadd.f32 %v555, %v931
          %v1011 = vadd.f32 %v560, %v936
          %v1012 = vadd.f32 %v565, %v941
          %v1013 = vadd.f32 %v570, %v946
          %v1014 = vadd.f32 %v575, %v951
          %v1015 = vadd.f32 %v580, %v956
          %v1016 = vadd.f32 %v585, %v961
          %v1017 = vadd.f32 %v590, %v966
          %v1018 = vadd.f32 %v595, %v971
          %v1019 = vadd.f32 %v600, %v976
          %v1020 = vadd.f32 %v605, %v981
          %v1021 = vadd.f32 %v610, %v986
          %v1022 = vadd.f32 %v615, %v991
          %v1023 = vadd.f32 %v620, %v996
          %v1024 = vadd.f32 %v625, %v1001
          %v1025 = vadd.f32 %v630, %v1006
          %v1026 = vxor.u32 %v1008, 2147483648
          %v1027 = vxor.u32 %v1009, 2147483648
          %v1028 = vxor.u32 %v1010, 2147483648
          %v1029 = vxor.u32 %v1011, 2147483648
          %v1030 = vxor.u32 %v1012, 2147483648
          %v1031 = vxor.u32 %v1013, 2147483648
          %v1032 = vxor.u32 %v1014, 2147483648
          %v1033 = vxor.u32 %v1015, 2147483648
          %v1034 = vxor.u32 %v1016, 2147483648
          %v1035 = vmul.f32 %v1026, 1.442695
          %v1036 = vpow.pop %v1035
          %v1037 = vmul.f32 %v1027, 1.442695
          %v1038 = vpow.pop %v1037
          %v1039 = vmul.f32 %v1028, 1.442695
          %v1040 = vpow.pop %v1039
          %v1041 = vmul.f32 %v1029, 1.442695
          %v1042 = vpow.pop %v1041
          %v1043 = vmul.f32 %v1030, 1.442695
          %v1044 = vpow.pop %v1043
          %v1045 = vmul.f32 %v1031, 1.442695
          %v1046 = vpow.pop %v1045
          %v1047 = vmul.f32 %v1032, 1.442695
          %v1048 = vpow.pop %v1047
          %v1049 = vmul.f32 %v1033, 1.442695
          %v1050 = vpow.pop %v1049
          %v1051 = vmul.f32 %v1034, 1.442695
          %v1052 = vpow.pop %v1051
          %v1053 = vadd.f32 %v1036, 1.0
          %v1054 = vadd.f32 %v1038, 1.0
          %v1055 = vadd.f32 %v1040, 1.0
          %v1056 = vadd.f32 %v1042, 1.0
          %v1057 = vadd.f32 %v1044, 1.0
          %v1058 = vadd.f32 %v1046, 1.0
          %v1059 = vadd.f32 %v1048, 1.0
          %v1060 = vadd.f32 %v1050, 1.0
          %v1061 = vadd.f32 %v1052, 1.0
          %v1062 = vrcp.pop %v1053
          %v1063 = vmul.f32 1.0, %v1062
          %v1064 = vrcp.pop %v1054
          %v1065 = vmul.f32 1.0, %v1064
          %v1066 = vrcp.pop %v1055
          %v1067 = vmul.f32 1.0, %v1066
          %v1068 = vrcp.pop %v1056
          %v1069 = vmul.f32 1.0, %v1068
          %v1070 = vrcp.pop %v1057
          %v1071 = vmul.f32 1.0, %v1070
          %v1072 = vrcp.pop %v1058
          %v1073 = vmul.f32 1.0, %v1072
          %v1074 = vrcp.pop %v1059
          %v1075 = vmul.f32 1.0, %v1074
          %v1076 = vrcp.pop %v1060
          %v1077 = vmul.f32 1.0, %v1076
          %v1078 = vrcp.pop %v1061
          %v1079 = vmul.f32 1.0, %v1078
          %v1080 = vmul.f32 %v816, %v1063
          %v1081 = vmul.f32 %v820, %v1065
          %v1082 = vmul.f32 %v824, %v1067
          %v1083 = vmul.f32 %v828, %v1069
          %v1084 = vmul.f32 %v832, %v1071
          %v1085 = vmul.f32 %v836, %v1073
          %v1086 = vmul.f32 %v840, %v1075
          %v1087 = vmul.f32 %v844, %v1077
          %v1088 = vmul.f32 %v848, %v1079
          %v1089 = vadd.f32 %v1017, %v1080
          %v1090 = vadd.f32 %v1018, %v1081
          %v1091 = vadd.f32 %v1019, %v1082
          %v1092 = vadd.f32 %v1020, %v1083
          %v1093 = vadd.f32 %v1021, %v1084
          %v1094 = vadd.f32 %v1022, %v1085
          %v1095 = vadd.f32 %v1023, %v1086
          %v1096 = vadd.f32 %v1024, %v1087
          %v1097 = vadd.f32 %v1025, %v1088
          %s1098 = sadd.f32 %s896, %s305
          %v1099 = vstv %s1098
          %v1100 = vmul.f32 %v1099, %v333
          %v1101 = vmul.f32 %v1099, %v334
          %v1102 = vmul.f32 %v1099, %v335
          %v1103 = vmul.f32 %v1099, %v336
          %v1104 = vmul.f32 %v1099, %v337
          %v1105 = vmul.f32 %v1099, %v338
          %v1106 = vmul.f32 %v1099, %v339
          %v1107 = vmul.f32 %v1099, %v340
          %v1108 = vmul.f32 %v1099, %v341
          %v1109 = vmul.f32 %v1099, %v342
          %v1110 = vmul.f32 %v1099, %v343
          %v1111 = vmul.f32 %v1099, %v344
          %v1112 = vmul.f32 %v1099, %v345
          %v1113 = vmul.f32 %v1099, %v346
          %v1114 = vmul.f32 %v1099, %v347
          %v1115 = vmul.f32 %v1099, %v348
          %v1116 = vmul.f32 %v1099, %v349
          %v1117 = vmul.f32 %v1099, %v350
          %1119 = vset.pattern.permute.xlu0 8
          %1120 = vperm.xlu0 %1119, %v1100
          %v1121 = vpop.permute.xlu0 %1120
          %1124 = vset.pattern.permute.xlu0 8
          %1125 = vperm.xlu0 %1124, %v1101
          %v1126 = vpop.permute.xlu0 %1125
          %1129 = vset.pattern.permute.xlu0 8
          %1130 = vperm.xlu0 %1129, %v1102
          %v1131 = vpop.permute.xlu0 %1130
          %1134 = vset.pattern.permute.xlu0 8
          %1135 = vperm.xlu0 %1134, %v1103
          %v1136 = vpop.permute.xlu0 %1135
          %1139 = vset.pattern.permute.xlu0 8
          %1140 = vperm.xlu0 %1139, %v1104
          %v1141 = vpop.permute.xlu0 %1140
          %1144 = vset.pattern.permute.xlu0 8
          %1145 = vperm.xlu0 %1144, %v1105
          %v1146 = vpop.permute.xlu0 %1145
          %1149 = vset.pattern.permute.xlu0 8
          %1150 = vperm.xlu0 %1149, %v1106
          %v1151 = vpop.permute.xlu0 %1150
          %1154 = vset.pattern.permute.xlu0 8
          %1155 = vperm.xlu0 %1154, %v1107
          %v1156 = vpop.permute.xlu0 %1155
          %1159 = vset.pattern.permute.xlu0 8
          %1160 = vperm.xlu0 %1159, %v1108
          %v1161 = vpop.permute.xlu0 %1160
          %1164 = vset.pattern.permute.xlu0 8
          %1165 = vperm.xlu0 %1164, %v1109
          %v1166 = vpop.permute.xlu0 %1165
          %1169 = vset.pattern.permute.xlu0 8
          %1170 = vperm.xlu0 %1169, %v1110
          %v1171 = vpop.permute.xlu0 %1170
          %1174 = vset.pattern.permute.xlu0 8
          %1175 = vperm.xlu0 %1174, %v1111
          %v1176 = vpop.permute.xlu0 %1175
          %1179 = vset.pattern.permute.xlu0 8
          %1180 = vperm.xlu0 %1179, %v1112
          %v1181 = vpop.permute.xlu0 %1180
          %1184 = vset.pattern.permute.xlu0 8
          %1185 = vperm.xlu0 %1184, %v1113
          %v1186 = vpop.permute.xlu0 %1185
          %1189 = vset.pattern.permute.xlu0 8
          %1190 = vperm.xlu0 %1189, %v1114
          %v1191 = vpop.permute.xlu0 %1190
          %1194 = vset.pattern.permute.xlu0 8
          %1195 = vperm.xlu0 %1194, %v1115
          %v1196 = vpop.permute.xlu0 %1195
          %1199 = vset.pattern.permute.xlu0 8
          %1200 = vperm.xlu0 %1199, %v1116
          %v1201 = vpop.permute.xlu0 %1200
          %1204 = vset.pattern.permute.xlu0 8
          %1205 = vperm.xlu0 %1204, %v1117
          %v1206 = vpop.permute.xlu0 %1205
          %v1208 = vadd.f32 %v545, %v1121
          %v1209 = vadd.f32 %v550, %v1126
          %v1210 = vadd.f32 %v555, %v1131
          %v1211 = vadd.f32 %v560, %v1136
          %v1212 = vadd.f32 %v565, %v1141
          %v1213 = vadd.f32 %v570, %v1146
          %v1214 = vadd.f32 %v575, %v1151
          %v1215 = vadd.f32 %v580, %v1156
          %v1216 = vadd.f32 %v585, %v1161
          %v1217 = vadd.f32 %v590, %v1166
          %v1218 = vadd.f32 %v595, %v1171
          %v1219 = vadd.f32 %v600, %v1176
          %v1220 = vadd.f32 %v605, %v1181
          %v1221 = vadd.f32 %v610, %v1186
          %v1222 = vadd.f32 %v615, %v1191
          %v1223 = vadd.f32 %v620, %v1196
          %v1224 = vadd.f32 %v625, %v1201
          %v1225 = vadd.f32 %v630, %v1206
          %v1226 = vxor.u32 %v1208, 2147483648
          %v1227 = vxor.u32 %v1209, 2147483648
          %v1228 = vxor.u32 %v1210, 2147483648
          %v1229 = vxor.u32 %v1211, 2147483648
          %v1230 = vxor.u32 %v1212, 2147483648
          %v1231 = vxor.u32 %v1213, 2147483648
          %v1232 = vxor.u32 %v1214, 2147483648
          %v1233 = vxor.u32 %v1215, 2147483648
          %v1234 = vxor.u32 %v1216, 2147483648
          %v1235 = vmul.f32 %v1226, 1.442695
          %v1236 = vpow.pop %v1235
          %v1237 = vmul.f32 %v1227, 1.442695
          %v1238 = vpow.pop %v1237
          %v1239 = vmul.f32 %v1228, 1.442695
          %v1240 = vpow.pop %v1239
          %v1241 = vmul.f32 %v1229, 1.442695
          %v1242 = vpow.pop %v1241
          %v1243 = vmul.f32 %v1230, 1.442695
          %v1244 = vpow.pop %v1243
          %v1245 = vmul.f32 %v1231, 1.442695
          %v1246 = vpow.pop %v1245
          %v1247 = vmul.f32 %v1232, 1.442695
          %v1248 = vpow.pop %v1247
          %v1249 = vmul.f32 %v1233, 1.442695
          %v1250 = vpow.pop %v1249
          %v1251 = vmul.f32 %v1234, 1.442695
          %v1252 = vpow.pop %v1251
          %v1253 = vadd.f32 %v1236, 1.0
          %v1254 = vadd.f32 %v1238, 1.0
          %v1255 = vadd.f32 %v1240, 1.0
          %v1256 = vadd.f32 %v1242, 1.0
          %v1257 = vadd.f32 %v1244, 1.0
          %v1258 = vadd.f32 %v1246, 1.0
          %v1259 = vadd.f32 %v1248, 1.0
          %v1260 = vadd.f32 %v1250, 1.0
          %v1261 = vadd.f32 %v1252, 1.0
          %v1262 = vrcp.pop %v1253
          %v1263 = vmul.f32 1.0, %v1262
          %v1264 = vrcp.pop %v1254
          %v1265 = vmul.f32 1.0, %v1264
          %v1266 = vrcp.pop %v1255
          %v1267 = vmul.f32 1.0, %v1266
          %v1268 = vrcp.pop %v1256
          %v1269 = vmul.f32 1.0, %v1268
          %v1270 = vrcp.pop %v1257
          %v1271 = vmul.f32 1.0, %v1270
          %v1272 = vrcp.pop %v1258
          %v1273 = vmul.f32 1.0, %v1272
          %v1274 = vrcp.pop %v1259
          %v1275 = vmul.f32 1.0, %v1274
          %v1276 = vrcp.pop %v1260
          %v1277 = vmul.f32 1.0, %v1276
          %v1278 = vrcp.pop %v1261
          %v1279 = vmul.f32 1.0, %v1278
          %v1280 = vmul.f32 %v816, %v1263
          %v1281 = vmul.f32 %v820, %v1265
          %v1282 = vmul.f32 %v824, %v1267
          %v1283 = vmul.f32 %v828, %v1269
          %v1284 = vmul.f32 %v832, %v1271
          %v1285 = vmul.f32 %v836, %v1273
          %v1286 = vmul.f32 %v840, %v1275
          %v1287 = vmul.f32 %v844, %v1277
          %v1288 = vmul.f32 %v848, %v1279
          %v1289 = vadd.f32 %v1217, %v1280
          %v1290 = vadd.f32 %v1218, %v1281
          %v1291 = vadd.f32 %v1219, %v1282
          %v1292 = vadd.f32 %v1220, %v1283
          %v1293 = vadd.f32 %v1221, %v1284
          %v1294 = vadd.f32 %v1222, %v1285
          %v1295 = vadd.f32 %v1223, %v1286
          %v1296 = vadd.f32 %v1224, %v1287
          %v1297 = vadd.f32 %v1225, %v1288
          %v1298 = vpack.c.bf16 %v874, %v874
          %v1303 = vunpack.c.l.b16 %v308
          %v1304 = vunpack.c.l.b16 %v309
          %v1305 = vunpack.c.l.b16 %v310
          %v1306 = vunpack.c.l.b16 %v311
          %v1307 = vpack.c.b16 %v1304, %v1303
          %v1308 = vpack.c.b16 %v1306, %v1305
          %vm1309 = vcmask 31744
          %v1311 = vsel %vm1309, %v1307, 0
          %v1314 = vsel %vm1309, %v1308, 0
          %vm1316 = vcmask 1041408
          %v1318 = vsel %vm1316, %v1298, 0
          %1320 = vmatprep.subr.bf16.mxu0 0
          %1321 = vmatpush1.bf16.msra.mxu0 0
          %1322 = vmatprep.subr.bf16.mxu0 0
          %1323 = vmatpush1.bf16.msra.mxu0 0
          %1324 = vmatprep.subr.bf16.mxu0 0
          %1325 = vmatpush1.bf16.msra.mxu0 0
          %1326 = vmatprep.subr.bf16.mxu0 0
          %1327 = vmatpush1.bf16.msra.mxu0 0
          %1328 = vmatprep.subr.bf16.mxu0 0
          %1329 = vmatpush1.bf16.msra.mxu0 0
          %1330 = vmatprep.subr.bf16.mxu0 0
          %1331 = vmatpush1.bf16.msra.mxu0 0
          %1332 = vmatprep.subr.bf16.mxu0 0
          %1333 = vmatpush1.bf16.msra.mxu0 0
          %1334 = vmatprep.subr.bf16.mxu0 0
          %1335 = vmatpush1.bf16.msra.mxu0 %v1318
          %1336 = vmatprep.subr.bf16.mxu0 0
          %1337 = vmatpush2.bf16.msra.mxu0 0
          %1338 = vmatprep.subr.bf16.mxu0 0
          %1339 = vmatpush2.bf16.msra.mxu0 0
          %1340 = vmatprep.subr.bf16.mxu0 0
          %1341 = vmatpush2.bf16.msra.mxu0 0
          %1342 = vmatprep.subr.bf16.mxu0 0
          %1343 = vmatpush2.bf16.msra.mxu0 0
          %1344 = vmatprep.subr.bf16.mxu0 0
          %1345 = vmatpush2.bf16.msra.mxu0 0
          %1346 = vmatprep.subr.bf16.mxu0 0
          %1347 = vmatpush2.bf16.msra.mxu0 0
          %1348 = vmatprep.subr.bf16.mxu0 0
          %1349 = vmatpush2.bf16.msra.mxu0 0
          %1350 = vmatprep.subr.bf16.mxu0 0
          %1351 = vmatpush2.bf16.msra.mxu0 0
          %1352 = vmatprep.mubr.bf16.mxu0 0
          %1353 = vmatmul.mubr.bf16.gmra.mxu0 %v1311
          %v1354 = vpop.f32.mrf.mxu0
          %v1355 = vadd.f32 0.0, %v1354
          %v1356 = vpop.f32.mrf.mxu0
          %v1357 = vpop.f32.mrf.mxu0
          %v1358 = vadd.f32 0.0, %v1357
          %v1359 = vpop.f32.mrf.mxu0
          %1360 = vmatprep.mubr.bf16.mxu0 0
          %1361 = vmatmul.mubr.bf16.gmra.mxu0 %v1314
          %v1362 = vpop.f32.mrf.mxu0
          %v1363 = vadd.f32 0.0, %v1362
          %v1364 = vpop.f32.mrf.mxu0
          %v1365 = vpop.f32.mrf.mxu0
          %v1366 = vadd.f32 0.0, %v1365
          %v1367 = vpop.f32.mrf.mxu0
          %1368 = vdwg.mxu0
          %v1369 = vmul.f32 %v1355, %v876
          %v1370 = vmul.f32 %v1358, %v877
          %v1371 = vmul.f32 %v1363, %v878
          %v1372 = vmul.f32 %v1366, %v879
          %v1373 = vadd.f32 %v1369, %v885
          %v1374 = vadd.f32 %v1370, %v886
          %v1375 = vadd.f32 %v1371, %v887
          %v1376 = vadd.f32 %v1372, %v888
          %v1377 = vtanh.pop %v1373
          %v1378 = vtanh.pop %v1374
          %v1379 = vtanh.pop %v1375
          %v1380 = vtanh.pop %v1376
          %v1381 = vmul.f32 %v1377, %v1377
          %v1382 = vmul.f32 %v1378, %v1378
          %v1383 = vmul.f32 %v1379, %v1379
          %v1384 = vmul.f32 %v1380, %v1380
          %v1385 = vsub.f32 1.0, %v1381
          %v1386 = vsub.f32 1.0, %v1382
          %v1387 = vsub.f32 1.0, %v1383
          %v1388 = vsub.f32 1.0, %v1384
          %v1389 = vmul.f32 %v1385, %v876
          %v1390 = vmul.f32 %v1386, %v877
          %v1391 = vmul.f32 %v1387, %v878
          %v1392 = vmul.f32 %v1388, %v879
          %v1393 = vpack.c.bf16 %v1378, %v1377
          %v1394 = vpack.c.bf16 %v1380, %v1379
          %v1395 = vpack.c.bf16 %v1390, %v1389
          %v1396 = vpack.c.bf16 %v1392, %v1391
          %v1417 = vunpack.c.l.b16 %v312
          %v1418 = vunpack.c.l.b16 %v313
          %v1419 = vunpack.c.l.b16 %v314
          %v1420 = vunpack.c.l.b16 %v315
          %v1421 = vunpack.c.l.b16 %v316
          %v1422 = vunpack.c.l.b16 %v317
          %v1423 = vunpack.c.l.b16 %v318
          %v1424 = vunpack.c.l.b16 %v319
          %v1425 = vunpack.c.l.b16 %v320
          %v1426 = vunpack.c.l.b16 %v321
          %v1427 = vunpack.c.l.b16 %v322
          %v1428 = vunpack.c.l.b16 %v323
          %v1429 = vunpack.c.l.b16 %v324
          %v1430 = vunpack.c.l.b16 %v325
          %v1431 = vunpack.c.l.b16 %v326
          %v1432 = vunpack.c.l.b16 %v327
          %v1433 = vunpack.c.l.b16 %v328
          %v1434 = vunpack.c.l.b16 %v329
          %v1435 = vunpack.c.l.b16 %v330
          %v1436 = vunpack.c.l.b16 %v331
          %v1437 = vpack.c.b16 %v1418, %v1417
          %v1438 = vpack.c.b16 %v1420, %v1419
          %v1439 = vpack.c.b16 %v1422, %v1421
          %v1440 = vpack.c.b16 %v1424, %v1423
          %v1441 = vpack.c.b16 %v1426, %v1425
          %v1442 = vpack.c.b16 %v1428, %v1427
          %v1443 = vpack.c.b16 %v1430, %v1429
          %v1444 = vpack.c.b16 %v1432, %v1431
          %v1445 = vpack.c.b16 %v1434, %v1433
          %v1446 = vpack.c.b16 %v1436, %v1435
          %vm1447 = vcmask 523264
          %v1449 = vsel %vm1447, %v1437, 0
          %v1452 = vsel %vm1447, %v1438, 0
          %v1455 = vsel %vm1447, %v1439, 0
          %v1458 = vsel %vm1447, %v1440, 0
          %v1461 = vsel %vm1447, %v1441, 0
          %v1464 = vsel %vm1447, %v1442, 0
          %v1467 = vsel %vm1447, %v1443, 0
          %v1470 = vsel %vm1447, %v1444, 0
          %v1473 = vsel %vm1447, %v1445, 0
          %v1476 = vsel %vm1447, %v1446, 0
          %1478 = vmatprep.subr.bf16.mxu0 0
          %1479 = vmatpush1.bf16.msra.mxu0 0
          %1480 = vmatprep.subr.bf16.mxu0 0
          %1481 = vmatpush1.bf16.msra.mxu0 0
          %1482 = vmatprep.subr.bf16.mxu0 0
          %1483 = vmatpush1.bf16.msra.mxu0 0
          %1484 = vmatprep.subr.bf16.mxu0 0
          %1485 = vmatpush1.bf16.msra.mxu0 0
          %1486 = vmatprep.subr.bf16.mxu0 0
          %1487 = vmatpush1.bf16.msra.mxu0 %v1396
          %1488 = vmatprep.subr.bf16.mxu0 0
          %1489 = vmatpush1.bf16.msra.mxu0 %v1395
          %1490 = vmatprep.subr.bf16.mxu0 0
          %1491 = vmatpush1.bf16.msra.mxu0 %v1394
          %1492 = vmatprep.subr.bf16.mxu0 0
          %1493 = vmatpush1.bf16.msra.mxu0 %v1393
          %1494 = vmatprep.subr.bf16.mxu0 0
          %1495 = vmatpush2.bf16.msra.mxu0 0
          %1496 = vmatprep.subr.bf16.mxu0 0
          %1497 = vmatpush2.bf16.msra.mxu0 0
          %1498 = vmatprep.subr.bf16.mxu0 0
          %1499 = vmatpush2.bf16.msra.mxu0 0
          %1500 = vmatprep.subr.bf16.mxu0 0
          %1501 = vmatpush2.bf16.msra.mxu0 0
          %1502 = vmatprep.subr.bf16.mxu0 0
          %1503 = vmatpush2.bf16.msra.mxu0 0
          %1504 = vmatprep.subr.bf16.mxu0 0
          %1505 = vmatpush2.bf16.msra.mxu0 0
          %1506 = vmatprep.subr.bf16.mxu0 0
          %1507 = vmatpush2.bf16.msra.mxu0 0
          %1508 = vmatprep.subr.bf16.mxu0 0
          %1509 = vmatpush2.bf16.msra.mxu0 0
          %1510 = vmatprep.mubr.bf16.mxu0 0
          %1511 = vmatmul.mubr.bf16.gmra.mxu0 %v1449
          %v1512 = vpop.f32.mrf.mxu0
          %v1513 = vadd.f32 0.0, %v1512
          %v1514 = vpop.f32.mrf.mxu0
          %v1515 = vpop.f32.mrf.mxu0
          %v1516 = vadd.f32 0.0, %v1515
          %v1517 = vpop.f32.mrf.mxu0
          %1518 = vmatprep.mubr.bf16.mxu0 0
          %1519 = vmatmul.mubr.bf16.gmra.mxu0 %v1452
          %v1520 = vpop.f32.mrf.mxu0
          %v1521 = vadd.f32 0.0, %v1520
          %v1522 = vpop.f32.mrf.mxu0
          %v1523 = vpop.f32.mrf.mxu0
          %v1524 = vadd.f32 0.0, %v1523
          %v1525 = vpop.f32.mrf.mxu0
          %1526 = vmatprep.mubr.bf16.mxu0 0
          %1527 = vmatmul.mubr.bf16.gmra.mxu0 %v1455
          %v1528 = vpop.f32.mrf.mxu0
          %v1529 = vadd.f32 0.0, %v1528
          %v1530 = vpop.f32.mrf.mxu0
          %v1531 = vpop.f32.mrf.mxu0
          %v1532 = vadd.f32 0.0, %v1531
          %v1533 = vpop.f32.mrf.mxu0
          %1534 = vmatprep.mubr.bf16.mxu0 0
          %1535 = vmatmul.mubr.bf16.gmra.mxu0 %v1458
          %v1536 = vpop.f32.mrf.mxu0
          %v1537 = vadd.f32 0.0, %v1536
          %v1538 = vpop.f32.mrf.mxu0
          %v1539 = vpop.f32.mrf.mxu0
          %v1540 = vadd.f32 0.0, %v1539
          %v1541 = vpop.f32.mrf.mxu0
          %1542 = vmatprep.mubr.bf16.mxu0 0
          %1543 = vmatmul.mubr.bf16.gmra.mxu0 %v1461
          %v1544 = vpop.f32.mrf.mxu0
          %v1545 = vadd.f32 0.0, %v1544
          %v1546 = vpop.f32.mrf.mxu0
          %v1547 = vpop.f32.mrf.mxu0
          %v1548 = vadd.f32 0.0, %v1547
          %v1549 = vpop.f32.mrf.mxu0
          %1550 = vmatprep.mubr.bf16.mxu0 0
          %1551 = vmatmul.mubr.bf16.gmra.mxu0 %v1464
          %v1552 = vpop.f32.mrf.mxu0
          %v1553 = vadd.f32 0.0, %v1552
          %v1554 = vpop.f32.mrf.mxu0
          %v1555 = vpop.f32.mrf.mxu0
          %v1556 = vadd.f32 0.0, %v1555
          %v1557 = vpop.f32.mrf.mxu0
          %1558 = vmatprep.mubr.bf16.mxu0 0
          %1559 = vmatmul.mubr.bf16.gmra.mxu0 %v1467
          %v1560 = vpop.f32.mrf.mxu0
          %v1561 = vadd.f32 0.0, %v1560
          %v1562 = vpop.f32.mrf.mxu0
          %v1563 = vpop.f32.mrf.mxu0
          %v1564 = vadd.f32 0.0, %v1563
          %v1565 = vpop.f32.mrf.mxu0
          %1566 = vmatprep.mubr.bf16.mxu0 0
          %1567 = vmatmul.mubr.bf16.gmra.mxu0 %v1470
          %v1568 = vpop.f32.mrf.mxu0
          %v1569 = vadd.f32 0.0, %v1568
          %v1570 = vpop.f32.mrf.mxu0
          %v1571 = vpop.f32.mrf.mxu0
          %v1572 = vadd.f32 0.0, %v1571
          %v1573 = vpop.f32.mrf.mxu0
          %1574 = vmatprep.mubr.bf16.mxu0 0
          %1575 = vmatmul.mubr.bf16.gmra.mxu0 %v1473
          %v1576 = vpop.f32.mrf.mxu0
          %v1577 = vadd.f32 0.0, %v1576
          %v1578 = vpop.f32.mrf.mxu0
          %v1579 = vpop.f32.mrf.mxu0
          %v1580 = vadd.f32 0.0, %v1579
          %v1581 = vpop.f32.mrf.mxu0
          %1582 = vmatprep.mubr.bf16.mxu0 0
          %1583 = vmatmul.mubr.bf16.gmra.mxu0 %v1476
          %v1584 = vpop.f32.mrf.mxu0
          %v1585 = vadd.f32 0.0, %v1584
          %v1586 = vpop.f32.mrf.mxu0
          %v1587 = vpop.f32.mrf.mxu0
          %v1588 = vadd.f32 0.0, %v1587
          %v1589 = vpop.f32.mrf.mxu0
          %1590 = vdwg.mxu0
          %v1591 = vmul.f32 %v1513, %v880
          %v1592 = vmul.f32 %v1516, %v881
          %v1593 = vmul.f32 %v1521, %v882
          %v1594 = vmul.f32 %v1524, %v883
          %v1595 = vadd.f32 %v1591, %v889
          %v1596 = vadd.f32 %v1592, %v890
          %v1597 = vadd.f32 %v1593, %v891
          %v1598 = vadd.f32 %v1594, %v892
          %v1599 = vtanh.pop %v1595
          %v1600 = vtanh.pop %v1596
          %v1601 = vtanh.pop %v1597
          %v1602 = vtanh.pop %v1598
          %v1603 = vmul.f32 %v1599, %v1599
          %v1604 = vmul.f32 %v1600, %v1600
          %v1605 = vmul.f32 %v1601, %v1601
          %v1606 = vmul.f32 %v1602, %v1602
          %v1607 = vsub.f32 1.0, %v1603
          %v1608 = vsub.f32 1.0, %v1604
          %v1609 = vsub.f32 1.0, %v1605
          %v1610 = vsub.f32 1.0, %v1606
          %v1611 = vmul.f32 %v1607, %v880
          %v1612 = vmul.f32 %v1608, %v881
          %v1613 = vmul.f32 %v1609, %v882
          %v1614 = vmul.f32 %v1610, %v883
          %v1615 = vmul.f32 %v1529, %v1611
          %v1616 = vmul.f32 %v1532, %v1612
          %v1617 = vmul.f32 %v1537, %v1613
          %v1618 = vmul.f32 %v1540, %v1614
          %v1619 = vmul.f32 %v1545, %v1611
          %v1620 = vmul.f32 %v1548, %v1612
          %v1621 = vmul.f32 %v1553, %v1613
          %v1622 = vmul.f32 %v1556, %v1614
          %v1623 = vmul.f32 %v1561, %v1611
          %v1624 = vmul.f32 %v1564, %v1612
          %v1625 = vmul.f32 %v1569, %v1613
          %v1626 = vmul.f32 %v1572, %v1614
          %v1627 = vmul.f32 %v1577, %v1611
          %v1628 = vmul.f32 %v1580, %v1612
          %v1629 = vmul.f32 %v1585, %v1613
          %v1630 = vmul.f32 %v1588, %v1614
          %v1631 = vpack.c.bf16 %v1600, %v1599
          %v1632 = vpack.c.bf16 %v1602, %v1601
          %v1633 = vpack.c.bf16 %v1616, %v1615
          %v1634 = vpack.c.bf16 %v1618, %v1617
          %v1635 = vpack.c.bf16 %v1620, %v1619
          %v1636 = vpack.c.bf16 %v1622, %v1621
          %v1637 = vpack.c.bf16 %v1624, %v1623
          %v1638 = vpack.c.bf16 %v1626, %v1625
          %v1639 = vpack.c.bf16 %v1628, %v1627
          %v1640 = vpack.c.bf16 %v1630, %v1629
          %v1642 = vunpack.c.l.b16 %v332
          %v1643 = vunpack.c.h.b16 %v332
          %v1644 = vpack.c.b16 %v1642, %v1642
          %v1645 = vpack.c.b16 %v1643, %v1643
          %vm1647 = vcmask 261120
          %v1649 = vsel %vm1647, %v1645, 0
          %1651 = vmatprep.subr.bf16.mxu0 0
          %1652 = vmatpush1.bf16.msra.mxu0 %v1638
          %1653 = vmatprep.subr.bf16.mxu0 0
          %1654 = vmatpush1.bf16.msra.mxu0 %v1637
          %1655 = vmatprep.subr.bf16.mxu0 0
          %1656 = vmatpush1.bf16.msra.mxu0 %v1636
          %1657 = vmatprep.subr.bf16.mxu0 0
          %1658 = vmatpush1.bf16.msra.mxu0 %v1635
          %1659 = vmatprep.subr.bf16.mxu0 0
          %1660 = vmatpush1.bf16.msra.mxu0 %v1634
          %1661 = vmatprep.subr.bf16.mxu0 0
          %1662 = vmatpush1.bf16.msra.mxu0 %v1633
          %1663 = vmatprep.subr.bf16.mxu0 0
          %1664 = vmatpush1.bf16.msra.mxu0 %v1632
          %1665 = vmatprep.subr.bf16.mxu0 0
          %1666 = vmatpush1.bf16.msra.mxu0 %v1631
          %1667 = vmatprep.subr.bf16.mxu0 0
          %1668 = vmatpush2.bf16.msra.mxu0 0
          %1669 = vmatprep.subr.bf16.mxu0 0
          %1670 = vmatpush2.bf16.msra.mxu0 0
          %1671 = vmatprep.subr.bf16.mxu0 0
          %1672 = vmatpush2.bf16.msra.mxu0 0
          %1673 = vmatprep.subr.bf16.mxu0 0
          %1674 = vmatpush2.bf16.msra.mxu0 0
          %1675 = vmatprep.subr.bf16.mxu0 0
          %1676 = vmatpush2.bf16.msra.mxu0 0
          %1677 = vmatprep.subr.bf16.mxu0 0
          %1678 = vmatpush2.bf16.msra.mxu0 0
          %1679 = vmatprep.subr.bf16.mxu0 0
          %1680 = vmatpush2.bf16.msra.mxu0 %v1640
          %1681 = vmatprep.subr.bf16.mxu0 0
          %1682 = vmatpush2.bf16.msra.mxu0 %v1639
          %1683 = vmatprep.mubr.bf16.mxu0 %v1649
          %1684 = vmatmul.mubr.bf16.gmra.mxu0 %v1644
          %v1685 = vpop.f32.mrf.mxu0
          %v1686 = vadd.f32 0.0, %v1685
          %v1687 = vpop.f32.mrf.mxu0
          %v1688 = vpop.f32.mrf.mxu0
          %v1689 = vpop.f32.mrf.mxu0
          %1690 = vdwg.mxu0
          %v1691 = vmul.f32 %v1686, %v884
          %v1692 = vadd.f32 %v1691, %v893
          %v1694 = vrot.slane %v1686, 4
          %v1696 = vmul.f32 %v884, %v1694
          %vm1697 = vcmask 1043456
          %v1698 = vsel %vm1697, %v1696, 0.0
          %v1699 = vrot.slane %v1698, 4
          %v1700 = vadd.f32 %v1698, %v1699
          %v1701 = vrot.slane %v1700, 2
          %v1702 = vadd.f32 %v1700, %v1701
          %v1703 = vrot.slane %v1702, 1
          %v1704 = vadd.f32 %v1702, %v1703
          %v1705 = vsub.f32 0.0, %v1704
          %v1706 = vstv %s897
          %v1707 = vmul.f32 %v1706, %v1692
          %v1708 = vadd.f32 %v874, %v1707
          %v1709 = vpack.c.bf16 %v1708, %v1708
          %v1711 = vsel %vm1316, %v1709, 0
          %1713 = vmatprep.subr.bf16.mxu0 0
          %1714 = vmatpush1.bf16.msra.mxu0 0
          %1715 = vmatprep.subr.bf16.mxu0 0
          %1716 = vmatpush1.bf16.msra.mxu0 0
          %1717 = vmatprep.subr.bf16.mxu0 0
          %1718 = vmatpush1.bf16.msra.mxu0 0
          %1719 = vmatprep.subr.bf16.mxu0 0
          %1720 = vmatpush1.bf16.msra.mxu0 0
          %1721 = vmatprep.subr.bf16.mxu0 0
          %1722 = vmatpush1.bf16.msra.mxu0 0
          %1723 = vmatprep.subr.bf16.mxu0 0
          %1724 = vmatpush1.bf16.msra.mxu0 0
          %1725 = vmatprep.subr.bf16.mxu0 0
          %1726 = vmatpush1.bf16.msra.mxu0 0
          %1727 = vmatprep.subr.bf16.mxu0 0
          %1728 = vmatpush1.bf16.msra.mxu0 %v1711
          %1729 = vmatprep.subr.bf16.mxu0 0
          %1730 = vmatpush2.bf16.msra.mxu0 0
          %1731 = vmatprep.subr.bf16.mxu0 0
          %1732 = vmatpush2.bf16.msra.mxu0 0
          %1733 = vmatprep.subr.bf16.mxu0 0
          %1734 = vmatpush2.bf16.msra.mxu0 0
          %1735 = vmatprep.subr.bf16.mxu0 0
          %1736 = vmatpush2.bf16.msra.mxu0 0
          %1737 = vmatprep.subr.bf16.mxu0 0
          %1738 = vmatpush2.bf16.msra.mxu0 0
          %1739 = vmatprep.subr.bf16.mxu0 0
          %1740 = vmatpush2.bf16.msra.mxu0 0
          %1741 = vmatprep.subr.bf16.mxu0 0
          %1742 = vmatpush2.bf16.msra.mxu0 0
          %1743 = vmatprep.subr.bf16.mxu0 0
          %1744 = vmatpush2.bf16.msra.mxu0 0
          %1745 = vmatprep.mubr.bf16.mxu0 0
          %1746 = vmatmul.mubr.bf16.gmra.mxu0 %v1311
          %v1747 = vpop.f32.mrf.mxu0
          %v1748 = vadd.f32 0.0, %v1747
          %v1749 = vpop.f32.mrf.mxu0
          %v1750 = vpop.f32.mrf.mxu0
          %v1751 = vadd.f32 0.0, %v1750
          %v1752 = vpop.f32.mrf.mxu0
          %1753 = vmatprep.mubr.bf16.mxu0 0
          %1754 = vmatmul.mubr.bf16.gmra.mxu0 %v1314
          %v1755 = vpop.f32.mrf.mxu0
          %v1756 = vadd.f32 0.0, %v1755
          %v1757 = vpop.f32.mrf.mxu0
          %v1758 = vpop.f32.mrf.mxu0
          %v1759 = vadd.f32 0.0, %v1758
          %v1760 = vpop.f32.mrf.mxu0
          %1761 = vdwg.mxu0
          %v1762 = vmul.f32 %v1748, %v1063
          %v1763 = vmul.f32 %v1751, %v1065
          %v1764 = vmul.f32 %v1756, %v1067
          %v1765 = vmul.f32 %v1759, %v1069
          %v1766 = vadd.f32 %v1762, %v1089
          %v1767 = vadd.f32 %v1763, %v1090
          %v1768 = vadd.f32 %v1764, %v1091
          %v1769 = vadd.f32 %v1765, %v1092
          %v1770 = vtanh.pop %v1766
          %v1771 = vtanh.pop %v1767
          %v1772 = vtanh.pop %v1768
          %v1773 = vtanh.pop %v1769
          %v1774 = vmul.f32 %v1770, %v1770
          %v1775 = vmul.f32 %v1771, %v1771
          %v1776 = vmul.f32 %v1772, %v1772
          %v1777 = vmul.f32 %v1773, %v1773
          %v1778 = vsub.f32 1.0, %v1774
          %v1779 = vsub.f32 1.0, %v1775
          %v1780 = vsub.f32 1.0, %v1776
          %v1781 = vsub.f32 1.0, %v1777
          %v1782 = vmul.f32 %v1778, %v1063
          %v1783 = vmul.f32 %v1779, %v1065
          %v1784 = vmul.f32 %v1780, %v1067
          %v1785 = vmul.f32 %v1781, %v1069
          %v1786 = vpack.c.bf16 %v1771, %v1770
          %v1787 = vpack.c.bf16 %v1773, %v1772
          %v1788 = vpack.c.bf16 %v1783, %v1782
          %v1789 = vpack.c.bf16 %v1785, %v1784
          %1790 = vmatprep.subr.bf16.mxu0 0
          %1791 = vmatpush1.bf16.msra.mxu0 0
          %1792 = vmatprep.subr.bf16.mxu0 0
          %1793 = vmatpush1.bf16.msra.mxu0 0
          %1794 = vmatprep.subr.bf16.mxu0 0
          %1795 = vmatpush1.bf16.msra.mxu0 0
          %1796 = vmatprep.subr.bf16.mxu0 0
          %1797 = vmatpush1.bf16.msra.mxu0 0
          %1798 = vmatprep.subr.bf16.mxu0 0
          %1799 = vmatpush1.bf16.msra.mxu0 %v1789
          %1800 = vmatprep.subr.bf16.mxu0 0
          %1801 = vmatpush1.bf16.msra.mxu0 %v1788
          %1802 = vmatprep.subr.bf16.mxu0 0
          %1803 = vmatpush1.bf16.msra.mxu0 %v1787
          %1804 = vmatprep.subr.bf16.mxu0 0
          %1805 = vmatpush1.bf16.msra.mxu0 %v1786
          %1806 = vmatprep.subr.bf16.mxu0 0
          %1807 = vmatpush2.bf16.msra.mxu0 0
          %1808 = vmatprep.subr.bf16.mxu0 0
          %1809 = vmatpush2.bf16.msra.mxu0 0
          %1810 = vmatprep.subr.bf16.mxu0 0
          %1811 = vmatpush2.bf16.msra.mxu0 0
          %1812 = vmatprep.subr.bf16.mxu0 0
          %1813 = vmatpush2.bf16.msra.mxu0 0
          %1814 = vmatprep.subr.bf16.mxu0 0
          %1815 = vmatpush2.bf16.msra.mxu0 0
          %1816 = vmatprep.subr.bf16.mxu0 0
          %1817 = vmatpush2.bf16.msra.mxu0 0
          %1818 = vmatprep.subr.bf16.mxu0 0
          %1819 = vmatpush2.bf16.msra.mxu0 0
          %1820 = vmatprep.subr.bf16.mxu0 0
          %1821 = vmatpush2.bf16.msra.mxu0 0
          %1822 = vmatprep.mubr.bf16.mxu0 0
          %1823 = vmatmul.mubr.bf16.gmra.mxu0 %v1449
          %v1824 = vpop.f32.mrf.mxu0
          %v1825 = vadd.f32 0.0, %v1824
          %v1826 = vpop.f32.mrf.mxu0
          %v1827 = vpop.f32.mrf.mxu0
          %v1828 = vadd.f32 0.0, %v1827
          %v1829 = vpop.f32.mrf.mxu0
          %1830 = vmatprep.mubr.bf16.mxu0 0
          %1831 = vmatmul.mubr.bf16.gmra.mxu0 %v1452
          %v1832 = vpop.f32.mrf.mxu0
          %v1833 = vadd.f32 0.0, %v1832
          %v1834 = vpop.f32.mrf.mxu0
          %v1835 = vpop.f32.mrf.mxu0
          %v1836 = vadd.f32 0.0, %v1835
          %v1837 = vpop.f32.mrf.mxu0
          %1838 = vmatprep.mubr.bf16.mxu0 0
          %1839 = vmatmul.mubr.bf16.gmra.mxu0 %v1455
          %v1840 = vpop.f32.mrf.mxu0
          %v1841 = vadd.f32 0.0, %v1840
          %v1842 = vpop.f32.mrf.mxu0
          %v1843 = vpop.f32.mrf.mxu0
          %v1844 = vadd.f32 0.0, %v1843
          %v1845 = vpop.f32.mrf.mxu0
          %1846 = vmatprep.mubr.bf16.mxu0 0
          %1847 = vmatmul.mubr.bf16.gmra.mxu0 %v1458
          %v1848 = vpop.f32.mrf.mxu0
          %v1849 = vadd.f32 0.0, %v1848
          %v1850 = vpop.f32.mrf.mxu0
          %v1851 = vpop.f32.mrf.mxu0
          %v1852 = vadd.f32 0.0, %v1851
          %v1853 = vpop.f32.mrf.mxu0
          %1854 = vmatprep.mubr.bf16.mxu0 0
          %1855 = vmatmul.mubr.bf16.gmra.mxu0 %v1461
          %v1856 = vpop.f32.mrf.mxu0
          %v1857 = vadd.f32 0.0, %v1856
          %v1858 = vpop.f32.mrf.mxu0
          %v1859 = vpop.f32.mrf.mxu0
          %v1860 = vadd.f32 0.0, %v1859
          %v1861 = vpop.f32.mrf.mxu0
          %1862 = vmatprep.mubr.bf16.mxu0 0
          %1863 = vmatmul.mubr.bf16.gmra.mxu0 %v1464
          %v1864 = vpop.f32.mrf.mxu0
          %v1865 = vadd.f32 0.0, %v1864
          %v1866 = vpop.f32.mrf.mxu0
          %v1867 = vpop.f32.mrf.mxu0
          %v1868 = vadd.f32 0.0, %v1867
          %v1869 = vpop.f32.mrf.mxu0
          %1870 = vmatprep.mubr.bf16.mxu0 0
          %1871 = vmatmul.mubr.bf16.gmra.mxu0 %v1467
          %v1872 = vpop.f32.mrf.mxu0
          %v1873 = vadd.f32 0.0, %v1872
          %v1874 = vpop.f32.mrf.mxu0
          %v1875 = vpop.f32.mrf.mxu0
          %v1876 = vadd.f32 0.0, %v1875
          %v1877 = vpop.f32.mrf.mxu0
          %1878 = vmatprep.mubr.bf16.mxu0 0
          %1879 = vmatmul.mubr.bf16.gmra.mxu0 %v1470
          %v1880 = vpop.f32.mrf.mxu0
          %v1881 = vadd.f32 0.0, %v1880
          %v1882 = vpop.f32.mrf.mxu0
          %v1883 = vpop.f32.mrf.mxu0
          %v1884 = vadd.f32 0.0, %v1883
          %v1885 = vpop.f32.mrf.mxu0
          %1886 = vmatprep.mubr.bf16.mxu0 0
          %1887 = vmatmul.mubr.bf16.gmra.mxu0 %v1473
          %v1888 = vpop.f32.mrf.mxu0
          %v1889 = vadd.f32 0.0, %v1888
          %v1890 = vpop.f32.mrf.mxu0
          %v1891 = vpop.f32.mrf.mxu0
          %v1892 = vadd.f32 0.0, %v1891
          %v1893 = vpop.f32.mrf.mxu0
          %1894 = vmatprep.mubr.bf16.mxu0 0
          %1895 = vmatmul.mubr.bf16.gmra.mxu0 %v1476
          %v1896 = vpop.f32.mrf.mxu0
          %v1897 = vadd.f32 0.0, %v1896
          %v1898 = vpop.f32.mrf.mxu0
          %v1899 = vpop.f32.mrf.mxu0
          %v1900 = vadd.f32 0.0, %v1899
          %v1901 = vpop.f32.mrf.mxu0
          %1902 = vdwg.mxu0
          %v1903 = vmul.f32 %v1825, %v1071
          %v1904 = vmul.f32 %v1828, %v1073
          %v1905 = vmul.f32 %v1833, %v1075
          %v1906 = vmul.f32 %v1836, %v1077
          %v1907 = vadd.f32 %v1903, %v1093
          %v1908 = vadd.f32 %v1904, %v1094
          %v1909 = vadd.f32 %v1905, %v1095
          %v1910 = vadd.f32 %v1906, %v1096
          %v1911 = vtanh.pop %v1907
          %v1912 = vtanh.pop %v1908
          %v1913 = vtanh.pop %v1909
          %v1914 = vtanh.pop %v1910
          %v1915 = vmul.f32 %v1911, %v1911
          %v1916 = vmul.f32 %v1912, %v1912
          %v1917 = vmul.f32 %v1913, %v1913
          %v1918 = vmul.f32 %v1914, %v1914
          %v1919 = vsub.f32 1.0, %v1915
          %v1920 = vsub.f32 1.0, %v1916
          %v1921 = vsub.f32 1.0, %v1917
          %v1922 = vsub.f32 1.0, %v1918
          %v1923 = vmul.f32 %v1919, %v1071
          %v1924 = vmul.f32 %v1920, %v1073
          %v1925 = vmul.f32 %v1921, %v1075
          %v1926 = vmul.f32 %v1922, %v1077
          %v1927 = vmul.f32 %v1841, %v1923
          %v1928 = vmul.f32 %v1844, %v1924
          %v1929 = vmul.f32 %v1849, %v1925
          %v1930 = vmul.f32 %v1852, %v1926
          %v1931 = vmul.f32 %v1857, %v1923
          %v1932 = vmul.f32 %v1860, %v1924
          %v1933 = vmul.f32 %v1865, %v1925
          %v1934 = vmul.f32 %v1868, %v1926
          %v1935 = vmul.f32 %v1873, %v1923
          %v1936 = vmul.f32 %v1876, %v1924
          %v1937 = vmul.f32 %v1881, %v1925
          %v1938 = vmul.f32 %v1884, %v1926
          %v1939 = vmul.f32 %v1889, %v1923
          %v1940 = vmul.f32 %v1892, %v1924
          %v1941 = vmul.f32 %v1897, %v1925
          %v1942 = vmul.f32 %v1900, %v1926
          %v1943 = vpack.c.bf16 %v1912, %v1911
          %v1944 = vpack.c.bf16 %v1914, %v1913
          %v1945 = vpack.c.bf16 %v1928, %v1927
          %v1946 = vpack.c.bf16 %v1930, %v1929
          %v1947 = vpack.c.bf16 %v1932, %v1931
          %v1948 = vpack.c.bf16 %v1934, %v1933
          %v1949 = vpack.c.bf16 %v1936, %v1935
          %v1950 = vpack.c.bf16 %v1938, %v1937
          %v1951 = vpack.c.bf16 %v1940, %v1939
          %v1952 = vpack.c.bf16 %v1942, %v1941
          %1953 = vmatprep.subr.bf16.mxu0 0
          %1954 = vmatpush1.bf16.msra.mxu0 %v1950
          %1955 = vmatprep.subr.bf16.mxu0 0
          %1956 = vmatpush1.bf16.msra.mxu0 %v1949
          %1957 = vmatprep.subr.bf16.mxu0 0
          %1958 = vmatpush1.bf16.msra.mxu0 %v1948
          %1959 = vmatprep.subr.bf16.mxu0 0
          %1960 = vmatpush1.bf16.msra.mxu0 %v1947
          %1961 = vmatprep.subr.bf16.mxu0 0
          %1962 = vmatpush1.bf16.msra.mxu0 %v1946
          %1963 = vmatprep.subr.bf16.mxu0 0
          %1964 = vmatpush1.bf16.msra.mxu0 %v1945
          %1965 = vmatprep.subr.bf16.mxu0 0
          %1966 = vmatpush1.bf16.msra.mxu0 %v1944
          %1967 = vmatprep.subr.bf16.mxu0 0
          %1968 = vmatpush1.bf16.msra.mxu0 %v1943
          %1969 = vmatprep.subr.bf16.mxu0 0
          %1970 = vmatpush2.bf16.msra.mxu0 0
          %1971 = vmatprep.subr.bf16.mxu0 0
          %1972 = vmatpush2.bf16.msra.mxu0 0
          %1973 = vmatprep.subr.bf16.mxu0 0
          %1974 = vmatpush2.bf16.msra.mxu0 0
          %1975 = vmatprep.subr.bf16.mxu0 0
          %1976 = vmatpush2.bf16.msra.mxu0 0
          %1977 = vmatprep.subr.bf16.mxu0 0
          %1978 = vmatpush2.bf16.msra.mxu0 0
          %1979 = vmatprep.subr.bf16.mxu0 0
          %1980 = vmatpush2.bf16.msra.mxu0 0
          %1981 = vmatprep.subr.bf16.mxu0 0
          %1982 = vmatpush2.bf16.msra.mxu0 %v1952
          %1983 = vmatprep.subr.bf16.mxu0 0
          %1984 = vmatpush2.bf16.msra.mxu0 %v1951
          %1985 = vmatprep.mubr.bf16.mxu0 %v1649
          %1986 = vmatmul.mubr.bf16.gmra.mxu0 %v1644
          %v1987 = vpop.f32.mrf.mxu0
          %v1988 = vadd.f32 0.0, %v1987
          %v1989 = vpop.f32.mrf.mxu0
          %v1990 = vpop.f32.mrf.mxu0
          %v1991 = vpop.f32.mrf.mxu0
          %1992 = vdwg.mxu0
          %v1993 = vmul.f32 %v1988, %v1079
          %v1994 = vadd.f32 %v1993, %v1097
          %v1996 = vrot.slane %v1988, 4
          %v1998 = vmul.f32 %v1079, %v1996
          %v1999 = vsel %vm1697, %v1998, 0.0
          %v2000 = vrot.slane %v1999, 4
          %v2001 = vadd.f32 %v1999, %v2000
          %v2002 = vrot.slane %v2001, 2
          %v2003 = vadd.f32 %v2001, %v2002
          %v2004 = vrot.slane %v2003, 1
          %v2005 = vadd.f32 %v2003, %v2004
          %v2006 = vsub.f32 0.0, %v2005
          %v2007 = vmul.f32 %v1706, %v1994
          %v2008 = vadd.f32 %v874, %v2007
          %v2009 = vpack.c.bf16 %v2008, %v2008
          %v2011 = vsel %vm1316, %v2009, 0
          %2013 = vmatprep.subr.bf16.mxu0 0
          %2014 = vmatpush1.bf16.msra.mxu0 0
          %2015 = vmatprep.subr.bf16.mxu0 0
          %2016 = vmatpush1.bf16.msra.mxu0 0
          %2017 = vmatprep.subr.bf16.mxu0 0
          %2018 = vmatpush1.bf16.msra.mxu0 0
          %2019 = vmatprep.subr.bf16.mxu0 0
          %2020 = vmatpush1.bf16.msra.mxu0 0
          %2021 = vmatprep.subr.bf16.mxu0 0
          %2022 = vmatpush1.bf16.msra.mxu0 0
          %2023 = vmatprep.subr.bf16.mxu0 0
          %2024 = vmatpush1.bf16.msra.mxu0 0
          %2025 = vmatprep.subr.bf16.mxu0 0
          %2026 = vmatpush1.bf16.msra.mxu0 0
          %2027 = vmatprep.subr.bf16.mxu0 0
          %2028 = vmatpush1.bf16.msra.mxu0 %v2011
          %2029 = vmatprep.subr.bf16.mxu0 0
          %2030 = vmatpush2.bf16.msra.mxu0 0
          %2031 = vmatprep.subr.bf16.mxu0 0
          %2032 = vmatpush2.bf16.msra.mxu0 0
          %2033 = vmatprep.subr.bf16.mxu0 0
          %2034 = vmatpush2.bf16.msra.mxu0 0
          %2035 = vmatprep.subr.bf16.mxu0 0
          %2036 = vmatpush2.bf16.msra.mxu0 0
          %2037 = vmatprep.subr.bf16.mxu0 0
          %2038 = vmatpush2.bf16.msra.mxu0 0
          %2039 = vmatprep.subr.bf16.mxu0 0
          %2040 = vmatpush2.bf16.msra.mxu0 0
          %2041 = vmatprep.subr.bf16.mxu0 0
          %2042 = vmatpush2.bf16.msra.mxu0 0
          %2043 = vmatprep.subr.bf16.mxu0 0
          %2044 = vmatpush2.bf16.msra.mxu0 0
          %2045 = vmatprep.mubr.bf16.mxu0 0
          %2046 = vmatmul.mubr.bf16.gmra.mxu0 %v1311
          %v2047 = vpop.f32.mrf.mxu0
          %v2048 = vadd.f32 0.0, %v2047
          %v2049 = vpop.f32.mrf.mxu0
          %v2050 = vpop.f32.mrf.mxu0
          %v2051 = vadd.f32 0.0, %v2050
          %v2052 = vpop.f32.mrf.mxu0
          %2053 = vmatprep.mubr.bf16.mxu0 0
          %2054 = vmatmul.mubr.bf16.gmra.mxu0 %v1314
          %v2055 = vpop.f32.mrf.mxu0
          %v2056 = vadd.f32 0.0, %v2055
          %v2057 = vpop.f32.mrf.mxu0
          %v2058 = vpop.f32.mrf.mxu0
          %v2059 = vadd.f32 0.0, %v2058
          %v2060 = vpop.f32.mrf.mxu0
          %2061 = vdwg.mxu0
          %v2062 = vmul.f32 %v2048, %v1063
          %v2063 = vmul.f32 %v2051, %v1065
          %v2064 = vmul.f32 %v2056, %v1067
          %v2065 = vmul.f32 %v2059, %v1069
          %v2066 = vadd.f32 %v2062, %v1089
          %v2067 = vadd.f32 %v2063, %v1090
          %v2068 = vadd.f32 %v2064, %v1091
          %v2069 = vadd.f32 %v2065, %v1092
          %v2070 = vtanh.pop %v2066
          %v2071 = vtanh.pop %v2067
          %v2072 = vtanh.pop %v2068
          %v2073 = vtanh.pop %v2069
          %v2074 = vmul.f32 %v2070, %v2070
          %v2075 = vmul.f32 %v2071, %v2071
          %v2076 = vmul.f32 %v2072, %v2072
          %v2077 = vmul.f32 %v2073, %v2073
          %v2078 = vsub.f32 1.0, %v2074
          %v2079 = vsub.f32 1.0, %v2075
          %v2080 = vsub.f32 1.0, %v2076
          %v2081 = vsub.f32 1.0, %v2077
          %v2082 = vmul.f32 %v2078, %v1063
          %v2083 = vmul.f32 %v2079, %v1065
          %v2084 = vmul.f32 %v2080, %v1067
          %v2085 = vmul.f32 %v2081, %v1069
          %v2086 = vpack.c.bf16 %v2071, %v2070
          %v2087 = vpack.c.bf16 %v2073, %v2072
          %v2088 = vpack.c.bf16 %v2083, %v2082
          %v2089 = vpack.c.bf16 %v2085, %v2084
          %2090 = vmatprep.subr.bf16.mxu0 0
          %2091 = vmatpush1.bf16.msra.mxu0 0
          %2092 = vmatprep.subr.bf16.mxu0 0
          %2093 = vmatpush1.bf16.msra.mxu0 0
          %2094 = vmatprep.subr.bf16.mxu0 0
          %2095 = vmatpush1.bf16.msra.mxu0 0
          %2096 = vmatprep.subr.bf16.mxu0 0
          %2097 = vmatpush1.bf16.msra.mxu0 0
          %2098 = vmatprep.subr.bf16.mxu0 0
          %2099 = vmatpush1.bf16.msra.mxu0 %v2089
          %2100 = vmatprep.subr.bf16.mxu0 0
          %2101 = vmatpush1.bf16.msra.mxu0 %v2088
          %2102 = vmatprep.subr.bf16.mxu0 0
          %2103 = vmatpush1.bf16.msra.mxu0 %v2087
          %2104 = vmatprep.subr.bf16.mxu0 0
          %2105 = vmatpush1.bf16.msra.mxu0 %v2086
          %2106 = vmatprep.subr.bf16.mxu0 0
          %2107 = vmatpush2.bf16.msra.mxu0 0
          %2108 = vmatprep.subr.bf16.mxu0 0
          %2109 = vmatpush2.bf16.msra.mxu0 0
          %2110 = vmatprep.subr.bf16.mxu0 0
          %2111 = vmatpush2.bf16.msra.mxu0 0
          %2112 = vmatprep.subr.bf16.mxu0 0
          %2113 = vmatpush2.bf16.msra.mxu0 0
          %2114 = vmatprep.subr.bf16.mxu0 0
          %2115 = vmatpush2.bf16.msra.mxu0 0
          %2116 = vmatprep.subr.bf16.mxu0 0
          %2117 = vmatpush2.bf16.msra.mxu0 0
          %2118 = vmatprep.subr.bf16.mxu0 0
          %2119 = vmatpush2.bf16.msra.mxu0 0
          %2120 = vmatprep.subr.bf16.mxu0 0
          %2121 = vmatpush2.bf16.msra.mxu0 0
          %2122 = vmatprep.mubr.bf16.mxu0 0
          %2123 = vmatmul.mubr.bf16.gmra.mxu0 %v1449
          %v2124 = vpop.f32.mrf.mxu0
          %v2125 = vadd.f32 0.0, %v2124
          %v2126 = vpop.f32.mrf.mxu0
          %v2127 = vpop.f32.mrf.mxu0
          %v2128 = vadd.f32 0.0, %v2127
          %v2129 = vpop.f32.mrf.mxu0
          %2130 = vmatprep.mubr.bf16.mxu0 0
          %2131 = vmatmul.mubr.bf16.gmra.mxu0 %v1452
          %v2132 = vpop.f32.mrf.mxu0
          %v2133 = vadd.f32 0.0, %v2132
          %v2134 = vpop.f32.mrf.mxu0
          %v2135 = vpop.f32.mrf.mxu0
          %v2136 = vadd.f32 0.0, %v2135
          %v2137 = vpop.f32.mrf.mxu0
          %2138 = vmatprep.mubr.bf16.mxu0 0
          %2139 = vmatmul.mubr.bf16.gmra.mxu0 %v1455
          %v2140 = vpop.f32.mrf.mxu0
          %v2141 = vadd.f32 0.0, %v2140
          %v2142 = vpop.f32.mrf.mxu0
          %v2143 = vpop.f32.mrf.mxu0
          %v2144 = vadd.f32 0.0, %v2143
          %v2145 = vpop.f32.mrf.mxu0
          %2146 = vmatprep.mubr.bf16.mxu0 0
          %2147 = vmatmul.mubr.bf16.gmra.mxu0 %v1458
          %v2148 = vpop.f32.mrf.mxu0
          %v2149 = vadd.f32 0.0, %v2148
          %v2150 = vpop.f32.mrf.mxu0
          %v2151 = vpop.f32.mrf.mxu0
          %v2152 = vadd.f32 0.0, %v2151
          %v2153 = vpop.f32.mrf.mxu0
          %2154 = vmatprep.mubr.bf16.mxu0 0
          %2155 = vmatmul.mubr.bf16.gmra.mxu0 %v1461
          %v2156 = vpop.f32.mrf.mxu0
          %v2157 = vadd.f32 0.0, %v2156
          %v2158 = vpop.f32.mrf.mxu0
          %v2159 = vpop.f32.mrf.mxu0
          %v2160 = vadd.f32 0.0, %v2159
          %v2161 = vpop.f32.mrf.mxu0
          %2162 = vmatprep.mubr.bf16.mxu0 0
          %2163 = vmatmul.mubr.bf16.gmra.mxu0 %v1464
          %v2164 = vpop.f32.mrf.mxu0
          %v2165 = vadd.f32 0.0, %v2164
          %v2166 = vpop.f32.mrf.mxu0
          %v2167 = vpop.f32.mrf.mxu0
          %v2168 = vadd.f32 0.0, %v2167
          %v2169 = vpop.f32.mrf.mxu0
          %2170 = vmatprep.mubr.bf16.mxu0 0
          %2171 = vmatmul.mubr.bf16.gmra.mxu0 %v1467
          %v2172 = vpop.f32.mrf.mxu0
          %v2173 = vadd.f32 0.0, %v2172
          %v2174 = vpop.f32.mrf.mxu0
          %v2175 = vpop.f32.mrf.mxu0
          %v2176 = vadd.f32 0.0, %v2175
          %v2177 = vpop.f32.mrf.mxu0
          %2178 = vmatprep.mubr.bf16.mxu0 0
          %2179 = vmatmul.mubr.bf16.gmra.mxu0 %v1470
          %v2180 = vpop.f32.mrf.mxu0
          %v2181 = vadd.f32 0.0, %v2180
          %v2182 = vpop.f32.mrf.mxu0
          %v2183 = vpop.f32.mrf.mxu0
          %v2184 = vadd.f32 0.0, %v2183
          %v2185 = vpop.f32.mrf.mxu0
          %2186 = vmatprep.mubr.bf16.mxu0 0
          %2187 = vmatmul.mubr.bf16.gmra.mxu0 %v1473
          %v2188 = vpop.f32.mrf.mxu0
          %v2189 = vadd.f32 0.0, %v2188
          %v2190 = vpop.f32.mrf.mxu0
          %v2191 = vpop.f32.mrf.mxu0
          %v2192 = vadd.f32 0.0, %v2191
          %v2193 = vpop.f32.mrf.mxu0
          %2194 = vmatprep.mubr.bf16.mxu0 0
          %2195 = vmatmul.mubr.bf16.gmra.mxu0 %v1476
          %v2196 = vpop.f32.mrf.mxu0
          %v2197 = vadd.f32 0.0, %v2196
          %v2198 = vpop.f32.mrf.mxu0
          %v2199 = vpop.f32.mrf.mxu0
          %v2200 = vadd.f32 0.0, %v2199
          %v2201 = vpop.f32.mrf.mxu0
          %2202 = vdwg.mxu0
          %v2203 = vmul.f32 %v2125, %v1071
          %v2204 = vmul.f32 %v2128, %v1073
          %v2205 = vmul.f32 %v2133, %v1075
          %v2206 = vmul.f32 %v2136, %v1077
          %v2207 = vadd.f32 %v2203, %v1093
          %v2208 = vadd.f32 %v2204, %v1094
          %v2209 = vadd.f32 %v2205, %v1095
          %v2210 = vadd.f32 %v2206, %v1096
          %v2211 = vtanh.pop %v2207
          %v2212 = vtanh.pop %v2208
          %v2213 = vtanh.pop %v2209
          %v2214 = vtanh.pop %v2210
          %v2215 = vmul.f32 %v2211, %v2211
          %v2216 = vmul.f32 %v2212, %v2212
          %v2217 = vmul.f32 %v2213, %v2213
          %v2218 = vmul.f32 %v2214, %v2214
          %v2219 = vsub.f32 1.0, %v2215
          %v2220 = vsub.f32 1.0, %v2216
          %v2221 = vsub.f32 1.0, %v2217
          %v2222 = vsub.f32 1.0, %v2218
          %v2223 = vmul.f32 %v2219, %v1071
          %v2224 = vmul.f32 %v2220, %v1073
          %v2225 = vmul.f32 %v2221, %v1075
          %v2226 = vmul.f32 %v2222, %v1077
          %v2227 = vmul.f32 %v2141, %v2223
          %v2228 = vmul.f32 %v2144, %v2224
          %v2229 = vmul.f32 %v2149, %v2225
          %v2230 = vmul.f32 %v2152, %v2226
          %v2231 = vmul.f32 %v2157, %v2223
          %v2232 = vmul.f32 %v2160, %v2224
          %v2233 = vmul.f32 %v2165, %v2225
          %v2234 = vmul.f32 %v2168, %v2226
          %v2235 = vmul.f32 %v2173, %v2223
          %v2236 = vmul.f32 %v2176, %v2224
          %v2237 = vmul.f32 %v2181, %v2225
          %v2238 = vmul.f32 %v2184, %v2226
          %v2239 = vmul.f32 %v2189, %v2223
          %v2240 = vmul.f32 %v2192, %v2224
          %v2241 = vmul.f32 %v2197, %v2225
          %v2242 = vmul.f32 %v2200, %v2226
          %v2243 = vpack.c.bf16 %v2212, %v2211
          %v2244 = vpack.c.bf16 %v2214, %v2213
          %v2245 = vpack.c.bf16 %v2228, %v2227
          %v2246 = vpack.c.bf16 %v2230, %v2229
          %v2247 = vpack.c.bf16 %v2232, %v2231
          %v2248 = vpack.c.bf16 %v2234, %v2233
          %v2249 = vpack.c.bf16 %v2236, %v2235
          %v2250 = vpack.c.bf16 %v2238, %v2237
          %v2251 = vpack.c.bf16 %v2240, %v2239
          %v2252 = vpack.c.bf16 %v2242, %v2241
          %2253 = vmatprep.subr.bf16.mxu0 0
          %2254 = vmatpush1.bf16.msra.mxu0 %v2250
          %2255 = vmatprep.subr.bf16.mxu0 0
          %2256 = vmatpush1.bf16.msra.mxu0 %v2249
          %2257 = vmatprep.subr.bf16.mxu0 0
          %2258 = vmatpush1.bf16.msra.mxu0 %v2248
          %2259 = vmatprep.subr.bf16.mxu0 0
          %2260 = vmatpush1.bf16.msra.mxu0 %v2247
          %2261 = vmatprep.subr.bf16.mxu0 0
          %2262 = vmatpush1.bf16.msra.mxu0 %v2246
          %2263 = vmatprep.subr.bf16.mxu0 0
          %2264 = vmatpush1.bf16.msra.mxu0 %v2245
          %2265 = vmatprep.subr.bf16.mxu0 0
          %2266 = vmatpush1.bf16.msra.mxu0 %v2244
          %2267 = vmatprep.subr.bf16.mxu0 0
          %2268 = vmatpush1.bf16.msra.mxu0 %v2243
          %2269 = vmatprep.subr.bf16.mxu0 0
          %2270 = vmatpush2.bf16.msra.mxu0 0
          %2271 = vmatprep.subr.bf16.mxu0 0
          %2272 = vmatpush2.bf16.msra.mxu0 0
          %2273 = vmatprep.subr.bf16.mxu0 0
          %2274 = vmatpush2.bf16.msra.mxu0 0
          %2275 = vmatprep.subr.bf16.mxu0 0
          %2276 = vmatpush2.bf16.msra.mxu0 0
          %2277 = vmatprep.subr.bf16.mxu0 0
          %2278 = vmatpush2.bf16.msra.mxu0 0
          %2279 = vmatprep.subr.bf16.mxu0 0
          %2280 = vmatpush2.bf16.msra.mxu0 0
          %2281 = vmatprep.subr.bf16.mxu0 0
          %2282 = vmatpush2.bf16.msra.mxu0 %v2252
          %2283 = vmatprep.subr.bf16.mxu0 0
          %2284 = vmatpush2.bf16.msra.mxu0 %v2251
          %2285 = vmatprep.mubr.bf16.mxu0 %v1649
          %2286 = vmatmul.mubr.bf16.gmra.mxu0 %v1644
          %v2287 = vpop.f32.mrf.mxu0
          %v2288 = vadd.f32 0.0, %v2287
          %v2289 = vpop.f32.mrf.mxu0
          %v2290 = vpop.f32.mrf.mxu0
          %v2291 = vpop.f32.mrf.mxu0
          %2292 = vdwg.mxu0
          %v2293 = vmul.f32 %v2288, %v1079
          %v2294 = vadd.f32 %v2293, %v1097
          %v2296 = vrot.slane %v2288, 4
          %v2298 = vmul.f32 %v1079, %v2296
          %v2299 = vsel %vm1697, %v2298, 0.0
          %v2300 = vrot.slane %v2299, 4
          %v2301 = vadd.f32 %v2299, %v2300
          %v2302 = vrot.slane %v2301, 2
          %v2303 = vadd.f32 %v2301, %v2302
          %v2304 = vrot.slane %v2303, 1
          %v2305 = vadd.f32 %v2303, %v2304
          %v2306 = vsub.f32 0.0, %v2305
          %v2307 = vstv %s305
          %v2308 = vmul.f32 %v2307, %v2294
          %v2309 = vadd.f32 %v874, %v2308
          %v2310 = vpack.c.bf16 %v2309, %v2309
          %v2312 = vsel %vm1316, %v2310, 0
          %2314 = vmatprep.subr.bf16.mxu0 0
          %2315 = vmatpush1.bf16.msra.mxu0 0
          %2316 = vmatprep.subr.bf16.mxu0 0
          %2317 = vmatpush1.bf16.msra.mxu0 0
          %2318 = vmatprep.subr.bf16.mxu0 0
          %2319 = vmatpush1.bf16.msra.mxu0 0
          %2320 = vmatprep.subr.bf16.mxu0 0
          %2321 = vmatpush1.bf16.msra.mxu0 0
          %2322 = vmatprep.subr.bf16.mxu0 0
          %2323 = vmatpush1.bf16.msra.mxu0 0
          %2324 = vmatprep.subr.bf16.mxu0 0
          %2325 = vmatpush1.bf16.msra.mxu0 0
          %2326 = vmatprep.subr.bf16.mxu0 0
          %2327 = vmatpush1.bf16.msra.mxu0 0
          %2328 = vmatprep.subr.bf16.mxu0 0
          %2329 = vmatpush1.bf16.msra.mxu0 %v2312
          %2330 = vmatprep.subr.bf16.mxu0 0
          %2331 = vmatpush2.bf16.msra.mxu0 0
          %2332 = vmatprep.subr.bf16.mxu0 0
          %2333 = vmatpush2.bf16.msra.mxu0 0
          %2334 = vmatprep.subr.bf16.mxu0 0
          %2335 = vmatpush2.bf16.msra.mxu0 0
          %2336 = vmatprep.subr.bf16.mxu0 0
          %2337 = vmatpush2.bf16.msra.mxu0 0
          %2338 = vmatprep.subr.bf16.mxu0 0
          %2339 = vmatpush2.bf16.msra.mxu0 0
          %2340 = vmatprep.subr.bf16.mxu0 0
          %2341 = vmatpush2.bf16.msra.mxu0 0
          %2342 = vmatprep.subr.bf16.mxu0 0
          %2343 = vmatpush2.bf16.msra.mxu0 0
          %2344 = vmatprep.subr.bf16.mxu0 0
          %2345 = vmatpush2.bf16.msra.mxu0 0
          %2346 = vmatprep.mubr.bf16.mxu0 0
          %2347 = vmatmul.mubr.bf16.gmra.mxu0 %v1311
          %v2348 = vpop.f32.mrf.mxu0
          %v2349 = vadd.f32 0.0, %v2348
          %v2350 = vpop.f32.mrf.mxu0
          %v2351 = vpop.f32.mrf.mxu0
          %v2352 = vadd.f32 0.0, %v2351
          %v2353 = vpop.f32.mrf.mxu0
          %2354 = vmatprep.mubr.bf16.mxu0 0
          %2355 = vmatmul.mubr.bf16.gmra.mxu0 %v1314
          %v2356 = vpop.f32.mrf.mxu0
          %v2357 = vadd.f32 0.0, %v2356
          %v2358 = vpop.f32.mrf.mxu0
          %v2359 = vpop.f32.mrf.mxu0
          %v2360 = vadd.f32 0.0, %v2359
          %v2361 = vpop.f32.mrf.mxu0
          %2362 = vdwg.mxu0
          %v2363 = vmul.f32 %v2349, %v1263
          %v2364 = vmul.f32 %v2352, %v1265
          %v2365 = vmul.f32 %v2357, %v1267
          %v2366 = vmul.f32 %v2360, %v1269
          %v2367 = vadd.f32 %v2363, %v1289
          %v2368 = vadd.f32 %v2364, %v1290
          %v2369 = vadd.f32 %v2365, %v1291
          %v2370 = vadd.f32 %v2366, %v1292
          %v2371 = vtanh.pop %v2367
          %v2372 = vtanh.pop %v2368
          %v2373 = vtanh.pop %v2369
          %v2374 = vtanh.pop %v2370
          %v2375 = vmul.f32 %v2371, %v2371
          %v2376 = vmul.f32 %v2372, %v2372
          %v2377 = vmul.f32 %v2373, %v2373
          %v2378 = vmul.f32 %v2374, %v2374
          %v2379 = vsub.f32 1.0, %v2375
          %v2380 = vsub.f32 1.0, %v2376
          %v2381 = vsub.f32 1.0, %v2377
          %v2382 = vsub.f32 1.0, %v2378
          %v2383 = vmul.f32 %v2379, %v1263
          %v2384 = vmul.f32 %v2380, %v1265
          %v2385 = vmul.f32 %v2381, %v1267
          %v2386 = vmul.f32 %v2382, %v1269
          %v2387 = vpack.c.bf16 %v2372, %v2371
          %v2388 = vpack.c.bf16 %v2374, %v2373
          %v2389 = vpack.c.bf16 %v2384, %v2383
          %v2390 = vpack.c.bf16 %v2386, %v2385
          %2391 = vmatprep.subr.bf16.mxu0 0
          %2392 = vmatpush1.bf16.msra.mxu0 0
          %2393 = vmatprep.subr.bf16.mxu0 0
          %2394 = vmatpush1.bf16.msra.mxu0 0
          %2395 = vmatprep.subr.bf16.mxu0 0
          %2396 = vmatpush1.bf16.msra.mxu0 0
          %2397 = vmatprep.subr.bf16.mxu0 0
          %2398 = vmatpush1.bf16.msra.mxu0 0
          %2399 = vmatprep.subr.bf16.mxu0 0
          %2400 = vmatpush1.bf16.msra.mxu0 %v2390
          %2401 = vmatprep.subr.bf16.mxu0 0
          %2402 = vmatpush1.bf16.msra.mxu0 %v2389
          %2403 = vmatprep.subr.bf16.mxu0 0
          %2404 = vmatpush1.bf16.msra.mxu0 %v2388
          %2405 = vmatprep.subr.bf16.mxu0 0
          %2406 = vmatpush1.bf16.msra.mxu0 %v2387
          %2407 = vmatprep.subr.bf16.mxu0 0
          %2408 = vmatpush2.bf16.msra.mxu0 0
          %2409 = vmatprep.subr.bf16.mxu0 0
          %2410 = vmatpush2.bf16.msra.mxu0 0
          %2411 = vmatprep.subr.bf16.mxu0 0
          %2412 = vmatpush2.bf16.msra.mxu0 0
          %2413 = vmatprep.subr.bf16.mxu0 0
          %2414 = vmatpush2.bf16.msra.mxu0 0
          %2415 = vmatprep.subr.bf16.mxu0 0
          %2416 = vmatpush2.bf16.msra.mxu0 0
          %2417 = vmatprep.subr.bf16.mxu0 0
          %2418 = vmatpush2.bf16.msra.mxu0 0
          %2419 = vmatprep.subr.bf16.mxu0 0
          %2420 = vmatpush2.bf16.msra.mxu0 0
          %2421 = vmatprep.subr.bf16.mxu0 0
          %2422 = vmatpush2.bf16.msra.mxu0 0
          %2423 = vmatprep.mubr.bf16.mxu0 0
          %2424 = vmatmul.mubr.bf16.gmra.mxu0 %v1449
          %v2425 = vpop.f32.mrf.mxu0
          %v2426 = vadd.f32 0.0, %v2425
          %v2427 = vpop.f32.mrf.mxu0
          %v2428 = vpop.f32.mrf.mxu0
          %v2429 = vadd.f32 0.0, %v2428
          %v2430 = vpop.f32.mrf.mxu0
          %2431 = vmatprep.mubr.bf16.mxu0 0
          %2432 = vmatmul.mubr.bf16.gmra.mxu0 %v1452
          %v2433 = vpop.f32.mrf.mxu0
          %v2434 = vadd.f32 0.0, %v2433
          %v2435 = vpop.f32.mrf.mxu0
          %v2436 = vpop.f32.mrf.mxu0
          %v2437 = vadd.f32 0.0, %v2436
          %v2438 = vpop.f32.mrf.mxu0
          %2439 = vmatprep.mubr.bf16.mxu0 0
          %2440 = vmatmul.mubr.bf16.gmra.mxu0 %v1455
          %v2441 = vpop.f32.mrf.mxu0
          %v2442 = vadd.f32 0.0, %v2441
          %v2443 = vpop.f32.mrf.mxu0
          %v2444 = vpop.f32.mrf.mxu0
          %v2445 = vadd.f32 0.0, %v2444
          %v2446 = vpop.f32.mrf.mxu0
          %2447 = vmatprep.mubr.bf16.mxu0 0
          %2448 = vmatmul.mubr.bf16.gmra.mxu0 %v1458
          %v2449 = vpop.f32.mrf.mxu0
          %v2450 = vadd.f32 0.0, %v2449
          %v2451 = vpop.f32.mrf.mxu0
          %v2452 = vpop.f32.mrf.mxu0
          %v2453 = vadd.f32 0.0, %v2452
          %v2454 = vpop.f32.mrf.mxu0
          %2455 = vmatprep.mubr.bf16.mxu0 0
          %2456 = vmatmul.mubr.bf16.gmra.mxu0 %v1461
          %v2457 = vpop.f32.mrf.mxu0
          %v2458 = vadd.f32 0.0, %v2457
          %v2459 = vpop.f32.mrf.mxu0
          %v2460 = vpop.f32.mrf.mxu0
          %v2461 = vadd.f32 0.0, %v2460
          %v2462 = vpop.f32.mrf.mxu0
          %2463 = vmatprep.mubr.bf16.mxu0 0
          %2464 = vmatmul.mubr.bf16.gmra.mxu0 %v1464
          %v2465 = vpop.f32.mrf.mxu0
          %v2466 = vadd.f32 0.0, %v2465
          %v2467 = vpop.f32.mrf.mxu0
          %v2468 = vpop.f32.mrf.mxu0
          %v2469 = vadd.f32 0.0, %v2468
          %v2470 = vpop.f32.mrf.mxu0
          %2471 = vmatprep.mubr.bf16.mxu0 0
          %2472 = vmatmul.mubr.bf16.gmra.mxu0 %v1467
          %v2473 = vpop.f32.mrf.mxu0
          %v2474 = vadd.f32 0.0, %v2473
          %v2475 = vpop.f32.mrf.mxu0
          %v2476 = vpop.f32.mrf.mxu0
          %v2477 = vadd.f32 0.0, %v2476
          %v2478 = vpop.f32.mrf.mxu0
          %2479 = vmatprep.mubr.bf16.mxu0 0
          %2480 = vmatmul.mubr.bf16.gmra.mxu0 %v1470
          %v2481 = vpop.f32.mrf.mxu0
          %v2482 = vadd.f32 0.0, %v2481
          %v2483 = vpop.f32.mrf.mxu0
          %v2484 = vpop.f32.mrf.mxu0
          %v2485 = vadd.f32 0.0, %v2484
          %v2486 = vpop.f32.mrf.mxu0
          %2487 = vmatprep.mubr.bf16.mxu0 0
          %2488 = vmatmul.mubr.bf16.gmra.mxu0 %v1473
          %v2489 = vpop.f32.mrf.mxu0
          %v2490 = vadd.f32 0.0, %v2489
          %v2491 = vpop.f32.mrf.mxu0
          %v2492 = vpop.f32.mrf.mxu0
          %v2493 = vadd.f32 0.0, %v2492
          %v2494 = vpop.f32.mrf.mxu0
          %2495 = vmatprep.mubr.bf16.mxu0 0
          %2496 = vmatmul.mubr.bf16.gmra.mxu0 %v1476
          %v2497 = vpop.f32.mrf.mxu0
          %v2498 = vadd.f32 0.0, %v2497
          %v2499 = vpop.f32.mrf.mxu0
          %v2500 = vpop.f32.mrf.mxu0
          %v2501 = vadd.f32 0.0, %v2500
          %v2502 = vpop.f32.mrf.mxu0
          %2503 = vdwg.mxu0
          %v2504 = vmul.f32 %v2426, %v1271
          %v2505 = vmul.f32 %v2429, %v1273
          %v2506 = vmul.f32 %v2434, %v1275
          %v2507 = vmul.f32 %v2437, %v1277
          %v2508 = vadd.f32 %v2504, %v1293
          %v2509 = vadd.f32 %v2505, %v1294
          %v2510 = vadd.f32 %v2506, %v1295
          %v2511 = vadd.f32 %v2507, %v1296
          %v2512 = vtanh.pop %v2508
          %v2513 = vtanh.pop %v2509
          %v2514 = vtanh.pop %v2510
          %v2515 = vtanh.pop %v2511
          %v2516 = vmul.f32 %v2512, %v2512
          %v2517 = vmul.f32 %v2513, %v2513
          %v2518 = vmul.f32 %v2514, %v2514
          %v2519 = vmul.f32 %v2515, %v2515
          %v2520 = vsub.f32 1.0, %v2516
          %v2521 = vsub.f32 1.0, %v2517
          %v2522 = vsub.f32 1.0, %v2518
          %v2523 = vsub.f32 1.0, %v2519
          %v2524 = vmul.f32 %v2520, %v1271
          %v2525 = vmul.f32 %v2521, %v1273
          %v2526 = vmul.f32 %v2522, %v1275
          %v2527 = vmul.f32 %v2523, %v1277
          %v2528 = vmul.f32 %v2442, %v2524
          %v2529 = vmul.f32 %v2445, %v2525
          %v2530 = vmul.f32 %v2450, %v2526
          %v2531 = vmul.f32 %v2453, %v2527
          %v2532 = vmul.f32 %v2458, %v2524
          %v2533 = vmul.f32 %v2461, %v2525
          %v2534 = vmul.f32 %v2466, %v2526
          %v2535 = vmul.f32 %v2469, %v2527
          %v2536 = vmul.f32 %v2474, %v2524
          %v2537 = vmul.f32 %v2477, %v2525
          %v2538 = vmul.f32 %v2482, %v2526
          %v2539 = vmul.f32 %v2485, %v2527
          %v2540 = vmul.f32 %v2490, %v2524
          %v2541 = vmul.f32 %v2493, %v2525
          %v2542 = vmul.f32 %v2498, %v2526
          %v2543 = vmul.f32 %v2501, %v2527
          %v2544 = vpack.c.bf16 %v2513, %v2512
          %v2545 = vpack.c.bf16 %v2515, %v2514
          %v2546 = vpack.c.bf16 %v2529, %v2528
          %v2547 = vpack.c.bf16 %v2531, %v2530
          %v2548 = vpack.c.bf16 %v2533, %v2532
          %v2549 = vpack.c.bf16 %v2535, %v2534
          %v2550 = vpack.c.bf16 %v2537, %v2536
          %v2551 = vpack.c.bf16 %v2539, %v2538
          %v2552 = vpack.c.bf16 %v2541, %v2540
          %v2553 = vpack.c.bf16 %v2543, %v2542
          %2554 = vmatprep.subr.bf16.mxu0 0
          %2555 = vmatpush1.bf16.msra.mxu0 %v2551
          %2556 = vmatprep.subr.bf16.mxu0 0
          %2557 = vmatpush1.bf16.msra.mxu0 %v2550
          %2558 = vmatprep.subr.bf16.mxu0 0
          %2559 = vmatpush1.bf16.msra.mxu0 %v2549
          %2560 = vmatprep.subr.bf16.mxu0 0
          %2561 = vmatpush1.bf16.msra.mxu0 %v2548
          %2562 = vmatprep.subr.bf16.mxu0 0
          %2563 = vmatpush1.bf16.msra.mxu0 %v2547
          %2564 = vmatprep.subr.bf16.mxu0 0
          %2565 = vmatpush1.bf16.msra.mxu0 %v2546
          %2566 = vmatprep.subr.bf16.mxu0 0
          %2567 = vmatpush1.bf16.msra.mxu0 %v2545
          %2568 = vmatprep.subr.bf16.mxu0 0
          %2569 = vmatpush1.bf16.msra.mxu0 %v2544
          %2570 = vmatprep.subr.bf16.mxu0 0
          %2571 = vmatpush2.bf16.msra.mxu0 0
          %2572 = vmatprep.subr.bf16.mxu0 0
          %2573 = vmatpush2.bf16.msra.mxu0 0
          %2574 = vmatprep.subr.bf16.mxu0 0
          %2575 = vmatpush2.bf16.msra.mxu0 0
          %2576 = vmatprep.subr.bf16.mxu0 0
          %2577 = vmatpush2.bf16.msra.mxu0 0
          %2578 = vmatprep.subr.bf16.mxu0 0
          %2579 = vmatpush2.bf16.msra.mxu0 0
          %2580 = vmatprep.subr.bf16.mxu0 0
          %2581 = vmatpush2.bf16.msra.mxu0 0
          %2582 = vmatprep.subr.bf16.mxu0 0
          %2583 = vmatpush2.bf16.msra.mxu0 %v2553
          %2584 = vmatprep.subr.bf16.mxu0 0
          %2585 = vmatpush2.bf16.msra.mxu0 %v2552
          %2586 = vmatprep.mubr.bf16.mxu0 %v1649
          %2587 = vmatmul.mubr.bf16.gmra.mxu0 %v1644
          %v2588 = vpop.f32.mrf.mxu0
          %v2589 = vadd.f32 0.0, %v2588
          %v2590 = vpop.f32.mrf.mxu0
          %v2591 = vpop.f32.mrf.mxu0
          %v2592 = vpop.f32.mrf.mxu0
          %2593 = vdwg.mxu0
          %v2594 = vmul.f32 %v2589, %v1279
          %v2595 = vadd.f32 %v2594, %v1297
          %v2597 = vrot.slane %v2589, 4
          %v2599 = vmul.f32 %v1279, %v2597
          %v2600 = vsel %vm1697, %v2599, 0.0
          %v2601 = vrot.slane %v2600, 4
          %v2602 = vadd.f32 %v2600, %v2601
          %v2603 = vrot.slane %v2602, 2
          %v2604 = vadd.f32 %v2602, %v2603
          %v2605 = vrot.slane %v2604, 1
          %v2606 = vadd.f32 %v2604, %v2605
          %v2607 = vsub.f32 0.0, %v2606
          %v2608 = vrcp.pop 6.0
          %s2609 = vtos %v2608
          %s2610 = smul.f32 %s305, %s2609
          %v2611 = vadd.f32 %v1994, %v2294
          %v2612 = vmul.f32 %v2611, 2.0
          %v2613 = vadd.f32 %v1692, %v2612
          %v2614 = vadd.f32 %v2613, %v2595
          %v2615 = vstv %s2610
          %v2616 = vmul.f32 %v2615, %v2614
          %v2617 = vadd.f32 %v874, %v2616
          %v2618 = vadd.f32 %v2006, %v2306
          %v2619 = vmul.f32 %v2618, 2.0
          %v2620 = vadd.f32 %v1705, %v2619
          %v2621 = vadd.f32 %v2620, %v2607
          %v2622 = vmul.f32 %v2615, %v2621
          %v2623 = vadd.f32 %v875, %v2622
        $region91: #{tpu_custom_call.1} parent=77 // loop_footer
          %s873 = sadd.s32 1, %s869
        $region92: #{tpu_custom_call.1} parent=77 // loop_footer_branch
          %868 = sbr.rel target = $region88
        $region93: #{tpu_custom_call.1} parent=77 // loop_exit
          _
        %vm2624 = vcmask 1043456
        %v2625 = vsel %vm2624, %v874, %v875
        %vm2626 = vcmask 1044480
        %v2627 = vsel %vm2626, %v2625, 0.0
        %2628 = vst [vmem:[%s302] sm:$0xff] %v2627
        %s2629 = sand.u32 %s160, 1
        %s2630 = scalar_lea.sflag [#allocation3], %s2629
        %s2631 = sand.u32 %s160, 1
        %s2632 = smul.addr %s2631, 8
        %s2633 = scalar_lea.vmem [#allocation6], %s2632
        // Predicated region
        $region94: #{tpu_custom_call.1} parent=77 // pred_check
          %p2634 = pneg %p170
        $region95: #{tpu_custom_call.1} parent=77 // pred_check_branch
          %2636 = sbr.rel (%p2634) target = $region97
        $region96: #{tpu_custom_call.1} parent=77 // pred_region
          %s2638 = ssub.s32 128, 128
          %2639 = vsyncadd %s2630, %s2638
          %s2640 = smul.addr %s21, 128
          %s2641 = scalar_lea.hbm %s6, %s2640
          %s2643 = sshll.u32 %s2633, 4
          %s2644 = int_to_ptr.vmem [resolvable:$true] %s2643
          %2646 = dma.vmem_to_hbm [thread:$0]  %s2644, 128, %s2641, %s2630
        $region97: #{tpu_custom_call.1} parent=77 // pred_fallthru
          _
      $region78: #{tpu_custom_call.1} parent=5 // pred_fallthru
        _
      %p2647 = scmp.le.s32.totalorder 2, %s16
      // Predicated region
      $region98: #{tpu_custom_call.1} parent=5 // pred_check
        %p2648 = pneg %p2647
      $region99: #{tpu_custom_call.1} parent=5 // pred_check_branch
        %2650 = sbr.rel (%p2648) target = $region101
      $region100: #{tpu_custom_call.1} parent=5 // pred_region
        %s2651 = ssub.s32 %s16, 2
        // Predicated region
        $region102: #{tpu_custom_call.1} parent=100 // pred_check
          %p2652 = pneg %p176
        $region103: #{tpu_custom_call.1} parent=100 // pred_check_branch
          %2654 = sbr.rel (%p2652) target = $region105
        $region104: #{tpu_custom_call.1} parent=100 // pred_region
          %s2655 = sand.u32 %s161, 1
          %s2656 = scalar_lea.sflag [#allocation3], %s2655
          %s2657 = sand.u32 %s161, 1
          %s2658 = smul.addr %s2657, 8
          %s2659 = scalar_lea.vmem [#allocation6], %s2658
          %2660 = dma.done %s2656, 128
        $region105: #{tpu_custom_call.1} parent=100 // pred_fallthru
          _
      $region101: #{tpu_custom_call.1} parent=5 // pred_fallthru
        _
    $region6: #{tpu_custom_call.1} parent=1 // loop_footer
      %s20 = sadd.s32 1, %s16
    $region7: #{tpu_custom_call.1} parent=1 // loop_footer_branch
      %15 = sbr.rel target = $region3
    $region8: #{tpu_custom_call.1} parent=1 // loop_exit
      _
    %2661 = vsyncpa [#allocation3], 1
    %s2662 = scalar_lea.sflag [#allocation3], 1
    %2663 = vsyncpa %s2662, 1
    %2664 = vsyncpa [#allocation4], 1
    %s2665 = scalar_lea.sflag [#allocation4], 1
    %2666 = vsyncpa %s2665, 1

</llo_original>
